<compile_context>
chip_gen: v5e
topology: v5e:2x2
jax: 0.10.0
libtpu: 0.0.40
codegen_flags: <defaults>
</compile_context>

<pallas_src>
import jax
import jax.numpy as jnp
from jax import lax
from jax.experimental import pallas as pl
from jax.experimental.pallas import tpu as pltpu

LANE = 128     # lane width: pad feature dims to this for unmasked stores
SUBLANE = 8    # sublane width: pad batch to this for aligned slab slices


def _round_up(n, m):
    return ((n + m - 1) // m) * m


# ----------------------------------------------------------------------------
# Fused kernel: embed gather -> input projection -> recurrence -> unembed.
# ----------------------------------------------------------------------------
def make_fused_forward_kernel(context, batch_block):
    cb = context * batch_block

    def kernel(idx_ref,                                   # SMEM (G*cb,) int32
               embed_ref, wxh_ref, whh_ref, bh_ref, wun_ref, bun_ref,
               o_ref, xbuf_ref, buf_ref):
        g = pl.program_id(0)
        base = g * cb

        # 1) In-kernel embedding gather; rows are step-major for this block.
        def gather(r, carry):
            tok = idx_ref[base + r]
            xbuf_ref[pl.ds(r, 1), :] = embed_ref[pl.ds(tok, 1), :]
            return carry

        lax.fori_loop(0, cb, gather, 0, unroll=True)

        # 2) Hoisted input projection + bias for ALL steps in one matmul
        #    (bf16 operands, f32 accumulation) -> VMEM slab.
        buf_ref[...] = (
            jnp.dot(xbuf_ref[...].astype(jnp.bfloat16), wxh_ref[...],
                    preferred_element_type=jnp.float32)
            + bh_ref[...]
        )

        # Loop-invariant recurrent weight (bf16), loaded once.
        whh = whh_ref[...]

        # 3) Sequential recurrence. Step 0 peeled: s0 == 0 so its s@Whh term
        #    is identically zero -> one fewer MXU push on the serial chain.
        s = jnp.tanh(buf_ref[pl.ds(0, batch_block), :])
        buf_ref[pl.ds(0, batch_block), :] = s

        def body(i, s):
            off = pl.multiple_of(i * batch_block, batch_block)
            pre = buf_ref[pl.ds(off, batch_block), :]
            s_new = jnp.tanh(
                pre + jnp.dot(s.astype(jnp.bfloat16), whh,
                              preferred_element_type=jnp.float32))
            buf_ref[pl.ds(off, batch_block), :] = s_new
            return s_new

        # TODO(synk): hold Whh in the MXU across steps via
        # pltpu.matmul_push_rhs / matmul_acc_lhs / matmul_pop; kept as jnp.dot
        # for portability / compile safety.
        lax.fori_loop(1, context, body, s,
                      unroll=True if context <= 32 else 8)

        # 4) Fused unembed on the VMEM-resident step outputs (lane-dense out).
        o_ref[...] = (
            jnp.dot(buf_ref[...].astype(jnp.bfloat16), wun_ref[...],
                    preferred_element_type=jnp.float32)
            + bun_ref[...]
        )

    return kernel


# ----------------------------------------------------------------------------
# Full forward (mirrors Network.forward)
# ----------------------------------------------------------------------------
def network_forward(params, x_idx, context):
    B, C = x_idx.shape
    assert C == context
    V, E = params["embed"].shape
    H = params["wxh"].shape[1]
    A = params["w_un"].shape[1]

    Vp = _round_up(V, SUBLANE)
    Ep = _round_up(E, LANE)
    Hp = _round_up(H, LANE)
    Ap = _round_up(A, LANE)

    # Pad batch to a sublane multiple; split into 2 grid blocks when each half
    # stays sublane-aligned (parallel grid axis -> both TensorCores on v7x;
    # a cheap 2-iteration sequential loop on v5e/v6e).
    Bp = _round_up(B, SUBLANE)
    G = 2 if (Bp % (2 * SUBLANE) == 0) else 1
    Bb = Bp // G
    cb = C * Bb

    # Token ids (padded rows use token 0; their outputs are discarded),
    # laid out block-major then step-major: idx[g, i, b] = x[g*Bb + b, i].
    x_pad = jnp.zeros((Bp, C), jnp.int32).at[:B].set(x_idx.astype(jnp.int32))
    idx_flat = jnp.transpose(x_pad.reshape(G, Bb, C), (0, 2, 1)).reshape(G * cb)

    # Zero-pad feature dims to the lane width.
    # INVARIANT: padded hidden lanes stay exactly 0 through the recurrence
    # because the padded columns of Wxh, Whh and b_h are 0 (tanh(0)=0) and the
    # padded rows of Wun are 0, so padding never contaminates real outputs.
    # Keep this zero-padding if a real weight-loading path replaces init.
    embed_p = jnp.pad(params["embed"], ((0, Vp - V), (0, Ep - E)))
    wxh_b = jnp.pad(params["wxh"], ((0, Ep - E), (0, Hp - H))).astype(jnp.bfloat16)
    whh_b = jnp.pad(params["whh"], ((0, Hp - H), (0, Hp - H))).astype(jnp.bfloat16)
    bh_p = jnp.pad(params["b_h"], ((0, 0), (0, Hp - H)))
    # NOTE: nn.Linear computes x @ W^T + b; params here are stored already as
    # (H, A), i.e. pre-transposed — transpose real PyTorch weights when loading.
    wun_b = jnp.pad(params["w_un"], ((0, Hp - H), (0, Ap - A))).astype(jnp.bfloat16)
    bun_p = jnp.pad(params["b_un"], ((0, 0), (0, Ap - A)))

    # Explicit VMEM budget (inputs/outputs double-buffered by the pipeline).
    est = 2 * (Vp * Ep * 4 + Ep * Hp * 2 + Hp * Hp * 2 + SUBLANE * Hp * 4
               + Hp * Ap * 2 + SUBLANE * Ap * 4 + cb * Ap * 4) \
        + cb * Ep * 4 + cb * Hp * 4
    vmem_limit = min(max(est + (4 << 20), 16 << 20), 48 << 20)
    # TODO(synk): once C*Bb*Hp outgrows the VMEM budget, tile the projection /
    # unembed over row blocks (emit_pipeline) instead of the resident slab.

    kernel = make_fused_forward_kernel(C, Bb)
    out2d = pl.pallas_call(
        kernel,
        out_shape=jax.ShapeDtypeStruct((G * cb, Ap), jnp.float32),
        grid_spec=pltpu.PrefetchScalarGridSpec(
            num_scalar_prefetch=1,
            grid=(G,),
            in_specs=[
                pl.BlockSpec((Vp, Ep), lambda g, idx: (0, 0)),   # embed table
                pl.BlockSpec((Ep, Hp), lambda g, idx: (0, 0)),   # Wxh (bf16)
                pl.BlockSpec((Hp, Hp), lambda g, idx: (0, 0)),   # Whh (bf16)
                pl.BlockSpec((1, Hp), lambda g, idx: (0, 0)),    # b_h
                pl.BlockSpec((Hp, Ap), lambda g, idx: (0, 0)),   # W_unembed
                pl.BlockSpec((1, Ap), lambda g, idx: (0, 0)),    # b_unembed
            ],
            out_specs=pl.BlockSpec((cb, Ap), lambda g, idx: (g, 0)),
            scratch_shapes=[
                pltpu.VMEM((cb, Ep), jnp.float32),   # gathered embeddings
                pltpu.VMEM((cb, Hp), jnp.float32),   # step-output slab
            ],
        ),
        compiler_params=pltpu.CompilerParams(
            dimension_semantics=("parallel",),
            vmem_limit_bytes=vmem_limit,
        ),
    )(idx_flat, embed_p, wxh_b, whh_b, bh_p, wun_b, bun_p)

    # (G*cb, Ap) -> (G, C, Bb, Ap) -> (Bp, C, Ap); drop batch/lane padding.
    y = out2d.reshape(G, C, Bb, Ap)
    y = jnp.transpose(y, (0, 2, 1, 3)).reshape(Bp, C, Ap)
    return y[:B, :, :A]


# ----------------------------------------------------------------------------
# Pure-JAX f32 reference (same synthetic cell), highest matmul precision.
# ----------------------------------------------------------------------------
def network_forward_ref(params, x_idx, context):
    hi = lax.Precision.HIGHEST
    emb = jnp.take(params["embed"], x_idx, axis=0)
    B = x_idx.shape[0]
    H = params["wxh"].shape[1]
    s = jnp.zeros((B, H), jnp.float32)
    outs = []
    for i in range(context):
        s = jnp.tanh(jnp.dot(emb[:, i], params["wxh"], precision=hi)
                     + jnp.dot(s, params["whh"], precision=hi)
                     + params["b_h"])
        outs.append(s)
    x = jnp.stack(outs, 1).reshape(B * context, -1)
    y = jnp.dot(x, params["w_un"], precision=hi) + params["b_un"]
    return y.reshape(B, context, -1)


def init_params(key, vocab_dim, embed_dim, unembed_dim, ans_dim):
    ks = jax.random.split(key, 6)
    scale = 0.1
    return {
        "embed": scale * jax.random.normal(ks[0], (vocab_dim, embed_dim), jnp.float32),
        "wxh":   scale * jax.random.normal(ks[1], (embed_dim, unembed_dim), jnp.float32),
        "whh":   scale * jax.random.normal(ks[2], (unembed_dim, unembed_dim), jnp.float32),
        "b_h":   scale * jax.random.normal(ks[3], (1, unembed_dim), jnp.float32),
        "w_un":  scale * jax.random.normal(ks[4], (unembed_dim, ans_dim), jnp.float32),
        "b_un":  scale * jax.random.normal(ks[5], (1, ans_dim), jnp.float32),
    }


if __name__ == "__main__":
    # Small shapes consistent with the module's forward:
    #   x: integer token ids of shape (batch, context)
    batch, context = 16, 8            # batch=16 exercises the 2-block grid
    vocab_dim, embed_dim = 32, 32
    unembed_dim, ans_dim = 32, 16     # cell hidden size == unembedDim

    key = jax.random.PRNGKey(0)
    k_param, k_data = jax.random.split(key)
    params = init_params(k_param, vocab_dim, embed_dim, unembed_dim, ans_dim)
    x_idx = jax.random.randint(k_data, (batch, context), 0, vocab_dim, dtype=jnp.int32)

    out = network_forward(params, x_idx, context)
    out = jax.block_until_ready(out)
    assert out.shape == (batch, context, ans_dim), out.shape
    assert out.dtype == jnp.float32

    ref = jax.block_until_ready(network_forward_ref(params, x_idx, context))
    # bf16 MXU operands with f32 accumulation vs. f32 HIGHEST-precision ref.
    assert jnp.allclose(out, ref, rtol=2e-2, atol=2e-2), "mismatch vs. reference"

    print("KERNEL_OK")
</pallas_src>

<mosaic_0001>
module attributes {stable_mosaic.version = 11 : i64} {
  func.func @kernel(%arg0: i32, %arg1: memref<128xi32, #tpu.memory_space<smem>>, %arg2: memref<32x128xf32, #tpu.memory_space<vmem>>, %arg3: memref<128x128xbf16, #tpu.memory_space<vmem>>, %arg4: memref<128x128xbf16, #tpu.memory_space<vmem>>, %arg5: memref<1x128xf32, #tpu.memory_space<vmem>>, %arg6: memref<128x128xbf16, #tpu.memory_space<vmem>>, %arg7: memref<1x128xf32, #tpu.memory_space<vmem>>, %arg8: memref<64x128xf32, #tpu.memory_space<vmem>>, %arg9: memref<64x128xf32, #tpu.memory_space<vmem>>, %arg10: memref<64x128xf32, #tpu.memory_space<vmem>>) attributes {dimension_semantics = [#tpu.dimension_semantics<parallel>], iteration_bounds = array<i64: 2>, scalar_prefetch = 1 : i64, scratch_operands = 2 : i64, tpu.core_type = #tpu.core_type<tc>, window_params = [{pipeline_mode = #tpu.pipeline_mode<synchronous>, transform_indices = @transform_0, window_bounds = array<i64: 32, 128>}, {pipeline_mode = #tpu.pipeline_mode<synchronous>, transform_indices = @transform_1, window_bounds = array<i64: 128, 128>}, {pipeline_mode = #tpu.pipeline_mode<synchronous>, transform_indices = @transform_2, window_bounds = array<i64: 128, 128>}, {pipeline_mode = #tpu.pipeline_mode<synchronous>, transform_indices = @transform_3, window_bounds = array<i64: 1, 128>}, {pipeline_mode = #tpu.pipeline_mode<synchronous>, transform_indices = @transform_4, window_bounds = array<i64: 128, 128>}, {pipeline_mode = #tpu.pipeline_mode<synchronous>, transform_indices = @transform_5, window_bounds = array<i64: 1, 128>}, {transform_indices = @transform_6, window_bounds = array<i64: 64, 128>}]} {
    %c64_i32 = arith.constant 64 : i32
    %0 = arith.muli %arg0, %c64_i32 : i32
    %c0_i32 = arith.constant 0 : i32
    %1 = arith.addi %0, %c0_i32 : i32
    %2 = arith.index_cast %1 : i32 to index
    %3 = memref.load %arg1[%2] : memref<128xi32, #tpu.memory_space<smem>>
    %4 = arith.index_cast %3 : i32 to index
    %c0 = arith.constant 0 : index
    %5 = vector.load %arg2[%4, %c0] : memref<32x128xf32, #tpu.memory_space<vmem>>, vector<1x128xf32>
    %6 = arith.index_cast %c0_i32 : i32 to index
    %c0_0 = arith.constant 0 : index
    %7 = vector.load %arg9[%6, %c0_0] : memref<64x128xf32, #tpu.memory_space<vmem>>, vector<1x128xf32>
    tpu.vector_store %arg9[%6, %c0_0], %5 {strides = array<i32>} : memref<64x128xf32, #tpu.memory_space<vmem>>, vector<1x128xf32>,
    %c1_i32 = arith.constant 1 : i32
    %8 = arith.addi %0, %c1_i32 : i32
    %9 = arith.index_cast %8 : i32 to index
    %10 = memref.load %arg1[%9] : memref<128xi32, #tpu.memory_space<smem>>
    %11 = arith.index_cast %10 : i32 to index
    %c0_1 = arith.constant 0 : index
    %12 = vector.load %arg2[%11, %c0_1] : memref<32x128xf32, #tpu.memory_space<vmem>>, vector<1x128xf32>
    %13 = arith.index_cast %c1_i32 : i32 to index
    %c0_2 = arith.constant 0 : index
    %14 = vector.load %arg9[%13, %c0_2] : memref<64x128xf32, #tpu.memory_space<vmem>>, vector<1x128xf32>
    tpu.vector_store %arg9[%13, %c0_2], %12 {strides = array<i32>} : memref<64x128xf32, #tpu.memory_space<vmem>>, vector<1x128xf32>,
    %c2_i32 = arith.constant 2 : i32
    %15 = arith.addi %0, %c2_i32 : i32
    %16 = arith.index_cast %15 : i32 to index
    %17 = memref.load %arg1[%16] : memref<128xi32, #tpu.memory_space<smem>>
    %18 = arith.index_cast %17 : i32 to index
    %c0_3 = arith.constant 0 : index
    %19 = vector.load %arg2[%18, %c0_3] : memref<32x128xf32, #tpu.memory_space<vmem>>, vector<1x128xf32>
    %20 = arith.index_cast %c2_i32 : i32 to index
    %c0_4 = arith.constant 0 : index
    %21 = vector.load %arg9[%20, %c0_4] : memref<64x128xf32, #tpu.memory_space<vmem>>, vector<1x128xf32>
    tpu.vector_store %arg9[%20, %c0_4], %19 {strides = array<i32>} : memref<64x128xf32, #tpu.memory_space<vmem>>, vector<1x128xf32>,
    %c3_i32 = arith.constant 3 : i32
    %22 = arith.addi %0, %c3_i32 : i32
    %23 = arith.index_cast %22 : i32 to index
    %24 = memref.load %arg1[%23] : memref<128xi32, #tpu.memory_space<smem>>
    %25 = arith.index_cast %24 : i32 to index
    %c0_5 = arith.constant 0 : index
    %26 = vector.load %arg2[%25, %c0_5] : memref<32x128xf32, #tpu.memory_space<vmem>>, vector<1x128xf32>
    %27 = arith.index_cast %c3_i32 : i32 to index
    %c0_6 = arith.constant 0 : index
    %28 = vector.load %arg9[%27, %c0_6] : memref<64x128xf32, #tpu.memory_space<vmem>>, vector<1x128xf32>
    tpu.vector_store %arg9[%27, %c0_6], %26 {strides = array<i32>} : memref<64x128xf32, #tpu.memory_space<vmem>>, vector<1x128xf32>,
    %c4_i32 = arith.constant 4 : i32
    %29 = arith.addi %0, %c4_i32 : i32
    %30 = arith.index_cast %29 : i32 to index
    %31 = memref.load %arg1[%30] : memref<128xi32, #tpu.memory_space<smem>>
    %32 = arith.index_cast %31 : i32 to index
    %c0_7 = arith.constant 0 : index
    %33 = vector.load %arg2[%32, %c0_7] : memref<32x128xf32, #tpu.memory_space<vmem>>, vector<1x128xf32>
    %34 = arith.index_cast %c4_i32 : i32 to index
    %c0_8 = arith.constant 0 : index
    %35 = vector.load %arg9[%34, %c0_8] : memref<64x128xf32, #tpu.memory_space<vmem>>, vector<1x128xf32>
    tpu.vector_store %arg9[%34, %c0_8], %33 {strides = array<i32>} : memref<64x128xf32, #tpu.memory_space<vmem>>, vector<1x128xf32>,
    %c5_i32 = arith.constant 5 : i32
    %36 = arith.addi %0, %c5_i32 : i32
    %37 = arith.index_cast %36 : i32 to index
    %38 = memref.load %arg1[%37] : memref<128xi32, #tpu.memory_space<smem>>
    %39 = arith.index_cast %38 : i32 to index
    %c0_9 = arith.constant 0 : index
    %40 = vector.load %arg2[%39, %c0_9] : memref<32x128xf32, #tpu.memory_space<vmem>>, vector<1x128xf32>
    %41 = arith.index_cast %c5_i32 : i32 to index
    %c0_10 = arith.constant 0 : index
    %42 = vector.load %arg9[%41, %c0_10] : memref<64x128xf32, #tpu.memory_space<vmem>>, vector<1x128xf32>
    tpu.vector_store %arg9[%41, %c0_10], %40 {strides = array<i32>} : memref<64x128xf32, #tpu.memory_space<vmem>>, vector<1x128xf32>,
    %c6_i32 = arith.constant 6 : i32
    %43 = arith.addi %0, %c6_i32 : i32
    %44 = arith.index_cast %43 : i32 to index
    %45 = memref.load %arg1[%44] : memref<128xi32, #tpu.memory_space<smem>>
    %46 = arith.index_cast %45 : i32 to index
    %c0_11 = arith.constant 0 : index
    %47 = vector.load %arg2[%46, %c0_11] : memref<32x128xf32, #tpu.memory_space<vmem>>, vector<1x128xf32>
    %48 = arith.index_cast %c6_i32 : i32 to index
    %c0_12 = arith.constant 0 : index
    %49 = vector.load %arg9[%48, %c0_12] : memref<64x128xf32, #tpu.memory_space<vmem>>, vector<1x128xf32>
    tpu.vector_store %arg9[%48, %c0_12], %47 {strides = array<i32>} : memref<64x128xf32, #tpu.memory_space<vmem>>, vector<1x128xf32>,
    %c7_i32 = arith.constant 7 : i32
    %50 = arith.addi %0, %c7_i32 : i32
    %51 = arith.index_cast %50 : i32 to index
    %52 = memref.load %arg1[%51] : memref<128xi32, #tpu.memory_space<smem>>
    %53 = arith.index_cast %52 : i32 to index
    %c0_13 = arith.constant 0 : index
    %54 = vector.load %arg2[%53, %c0_13] : memref<32x128xf32, #tpu.memory_space<vmem>>, vector<1x128xf32>
    %55 = arith.index_cast %c7_i32 : i32 to index
    %c0_14 = arith.constant 0 : index
    %56 = vector.load %arg9[%55, %c0_14] : memref<64x128xf32, #tpu.memory_space<vmem>>, vector<1x128xf32>
    tpu.vector_store %arg9[%55, %c0_14], %54 {strides = array<i32>} : memref<64x128xf32, #tpu.memory_space<vmem>>, vector<1x128xf32>,
    %c8_i32 = arith.constant 8 : i32
    %57 = arith.addi %0, %c8_i32 : i32
    %58 = arith.index_cast %57 : i32 to index
    %59 = memref.load %arg1[%58] : memref<128xi32, #tpu.memory_space<smem>>
    %60 = arith.index_cast %59 : i32 to index
    %c0_15 = arith.constant 0 : index
    %61 = vector.load %arg2[%60, %c0_15] : memref<32x128xf32, #tpu.memory_space<vmem>>, vector<1x128xf32>
    %62 = arith.index_cast %c8_i32 : i32 to index
    %c0_16 = arith.constant 0 : index
    %63 = vector.load %arg9[%62, %c0_16] : memref<64x128xf32, #tpu.memory_space<vmem>>, vector<1x128xf32>
    tpu.vector_store %arg9[%62, %c0_16], %61 {strides = array<i32>} : memref<64x128xf32, #tpu.memory_space<vmem>>, vector<1x128xf32>,
    %c9_i32 = arith.constant 9 : i32
    %64 = arith.addi %0, %c9_i32 : i32
    %65 = arith.index_cast %64 : i32 to index
    %66 = memref.load %arg1[%65] : memref<128xi32, #tpu.memory_space<smem>>
    %67 = arith.index_cast %66 : i32 to index
    %c0_17 = arith.constant 0 : index
    %68 = vector.load %arg2[%67, %c0_17] : memref<32x128xf32, #tpu.memory_space<vmem>>, vector<1x128xf32>
    %69 = arith.index_cast %c9_i32 : i32 to index
    %c0_18 = arith.constant 0 : index
    %70 = vector.load %arg9[%69, %c0_18] : memref<64x128xf32, #tpu.memory_space<vmem>>, vector<1x128xf32>
    tpu.vector_store %arg9[%69, %c0_18], %68 {strides = array<i32>} : memref<64x128xf32, #tpu.memory_space<vmem>>, vector<1x128xf32>,
    %c10_i32 = arith.constant 10 : i32
    %71 = arith.addi %0, %c10_i32 : i32
    %72 = arith.index_cast %71 : i32 to index
    %73 = memref.load %arg1[%72] : memref<128xi32, #tpu.memory_space<smem>>
    %74 = arith.index_cast %73 : i32 to index
    %c0_19 = arith.constant 0 : index
    %75 = vector.load %arg2[%74, %c0_19] : memref<32x128xf32, #tpu.memory_space<vmem>>, vector<1x128xf32>
    %76 = arith.index_cast %c10_i32 : i32 to index
    %c0_20 = arith.constant 0 : index
    %77 = vector.load %arg9[%76, %c0_20] : memref<64x128xf32, #tpu.memory_space<vmem>>, vector<1x128xf32>
    tpu.vector_store %arg9[%76, %c0_20], %75 {strides = array<i32>} : memref<64x128xf32, #tpu.memory_space<vmem>>, vector<1x128xf32>,
    %c11_i32 = arith.constant 11 : i32
    %78 = arith.addi %0, %c11_i32 : i32
    %79 = arith.index_cast %78 : i32 to index
    %80 = memref.load %arg1[%79] : memref<128xi32, #tpu.memory_space<smem>>
    %81 = arith.index_cast %80 : i32 to index
    %c0_21 = arith.constant 0 : index
    %82 = vector.load %arg2[%81, %c0_21] : memref<32x128xf32, #tpu.memory_space<vmem>>, vector<1x128xf32>
    %83 = arith.index_cast %c11_i32 : i32 to index
    %c0_22 = arith.constant 0 : index
    %84 = vector.load %arg9[%83, %c0_22] : memref<64x128xf32, #tpu.memory_space<vmem>>, vector<1x128xf32>
    tpu.vector_store %arg9[%83, %c0_22], %82 {strides = array<i32>} : memref<64x128xf32, #tpu.memory_space<vmem>>, vector<1x128xf32>,
    %c12_i32 = arith.constant 12 : i32
    %85 = arith.addi %0, %c12_i32 : i32
    %86 = arith.index_cast %85 : i32 to index
    %87 = memref.load %arg1[%86] : memref<128xi32, #tpu.memory_space<smem>>
    %88 = arith.index_cast %87 : i32 to index
    %c0_23 = arith.constant 0 : index
    %89 = vector.load %arg2[%88, %c0_23] : memref<32x128xf32, #tpu.memory_space<vmem>>, vector<1x128xf32>
    %90 = arith.index_cast %c12_i32 : i32 to index
    %c0_24 = arith.constant 0 : index
    %91 = vector.load %arg9[%90, %c0_24] : memref<64x128xf32, #tpu.memory_space<vmem>>, vector<1x128xf32>
    tpu.vector_store %arg9[%90, %c0_24], %89 {strides = array<i32>} : memref<64x128xf32, #tpu.memory_space<vmem>>, vector<1x128xf32>,
    %c13_i32 = arith.constant 13 : i32
    %92 = arith.addi %0, %c13_i32 : i32
    %93 = arith.index_cast %92 : i32 to index
    %94 = memref.load %arg1[%93] : memref<128xi32, #tpu.memory_space<smem>>
    %95 = arith.index_cast %94 : i32 to index
    %c0_25 = arith.constant 0 : index
    %96 = vector.load %arg2[%95, %c0_25] : memref<32x128xf32, #tpu.memory_space<vmem>>, vector<1x128xf32>
    %97 = arith.index_cast %c13_i32 : i32 to index
    %c0_26 = arith.constant 0 : index
    %98 = vector.load %arg9[%97, %c0_26] : memref<64x128xf32, #tpu.memory_space<vmem>>, vector<1x128xf32>
    tpu.vector_store %arg9[%97, %c0_26], %96 {strides = array<i32>} : memref<64x128xf32, #tpu.memory_space<vmem>>, vector<1x128xf32>,
    %c14_i32 = arith.constant 14 : i32
    %99 = arith.addi %0, %c14_i32 : i32
    %100 = arith.index_cast %99 : i32 to index
    %101 = memref.load %arg1[%100] : memref<128xi32, #tpu.memory_space<smem>>
    %102 = arith.index_cast %101 : i32 to index
    %c0_27 = arith.constant 0 : index
    %103 = vector.load %arg2[%102, %c0_27] : memref<32x128xf32, #tpu.memory_space<vmem>>, vector<1x128xf32>
    %104 = arith.index_cast %c14_i32 : i32 to index
    %c0_28 = arith.constant 0 : index
    %105 = vector.load %arg9[%104, %c0_28] : memref<64x128xf32, #tpu.memory_space<vmem>>, vector<1x128xf32>
    tpu.vector_store %arg9[%104, %c0_28], %103 {strides = array<i32>} : memref<64x128xf32, #tpu.memory_space<vmem>>, vector<1x128xf32>,
    %c15_i32 = arith.constant 15 : i32
    %106 = arith.addi %0, %c15_i32 : i32
    %107 = arith.index_cast %106 : i32 to index
    %108 = memref.load %arg1[%107] : memref<128xi32, #tpu.memory_space<smem>>
    %109 = arith.index_cast %108 : i32 to index
    %c0_29 = arith.constant 0 : index
    %110 = vector.load %arg2[%109, %c0_29] : memref<32x128xf32, #tpu.memory_space<vmem>>, vector<1x128xf32>
    %111 = arith.index_cast %c15_i32 : i32 to index
    %c0_30 = arith.constant 0 : index
    %112 = vector.load %arg9[%111, %c0_30] : memref<64x128xf32, #tpu.memory_space<vmem>>, vector<1x128xf32>
    tpu.vector_store %arg9[%111, %c0_30], %110 {strides = array<i32>} : memref<64x128xf32, #tpu.memory_space<vmem>>, vector<1x128xf32>,
    %c16_i32 = arith.constant 16 : i32
    %113 = arith.addi %0, %c16_i32 : i32
    %114 = arith.index_cast %113 : i32 to index
    %115 = memref.load %arg1[%114] : memref<128xi32, #tpu.memory_space<smem>>
    %116 = arith.index_cast %115 : i32 to index
    %c0_31 = arith.constant 0 : index
    %117 = vector.load %arg2[%116, %c0_31] : memref<32x128xf32, #tpu.memory_space<vmem>>, vector<1x128xf32>
    %118 = arith.index_cast %c16_i32 : i32 to index
    %c0_32 = arith.constant 0 : index
    %119 = vector.load %arg9[%118, %c0_32] : memref<64x128xf32, #tpu.memory_space<vmem>>, vector<1x128xf32>
    tpu.vector_store %arg9[%118, %c0_32], %117 {strides = array<i32>} : memref<64x128xf32, #tpu.memory_space<vmem>>, vector<1x128xf32>,
    %c17_i32 = arith.constant 17 : i32
    %120 = arith.addi %0, %c17_i32 : i32
    %121 = arith.index_cast %120 : i32 to index
    %122 = memref.load %arg1[%121] : memref<128xi32, #tpu.memory_space<smem>>
    %123 = arith.index_cast %122 : i32 to index
    %c0_33 = arith.constant 0 : index
    %124 = vector.load %arg2[%123, %c0_33] : memref<32x128xf32, #tpu.memory_space<vmem>>, vector<1x128xf32>
    %125 = arith.index_cast %c17_i32 : i32 to index
    %c0_34 = arith.constant 0 : index
    %126 = vector.load %arg9[%125, %c0_34] : memref<64x128xf32, #tpu.memory_space<vmem>>, vector<1x128xf32>
    tpu.vector_store %arg9[%125, %c0_34], %124 {strides = array<i32>} : memref<64x128xf32, #tpu.memory_space<vmem>>, vector<1x128xf32>,
    %c18_i32 = arith.constant 18 : i32
    %127 = arith.addi %0, %c18_i32 : i32
    %128 = arith.index_cast %127 : i32 to index
    %129 = memref.load %arg1[%128] : memref<128xi32, #tpu.memory_space<smem>>
    %130 = arith.index_cast %129 : i32 to index
    %c0_35 = arith.constant 0 : index
    %131 = vector.load %arg2[%130, %c0_35] : memref<32x128xf32, #tpu.memory_space<vmem>>, vector<1x128xf32>
    %132 = arith.index_cast %c18_i32 : i32 to index
    %c0_36 = arith.constant 0 : index
    %133 = vector.load %arg9[%132, %c0_36] : memref<64x128xf32, #tpu.memory_space<vmem>>, vector<1x128xf32>
    tpu.vector_store %arg9[%132, %c0_36], %131 {strides = array<i32>} : memref<64x128xf32, #tpu.memory_space<vmem>>, vector<1x128xf32>,
    %c19_i32 = arith.constant 19 : i32
    %134 = arith.addi %0, %c19_i32 : i32
    %135 = arith.index_cast %134 : i32 to index
    %136 = memref.load %arg1[%135] : memref<128xi32, #tpu.memory_space<smem>>
    %137 = arith.index_cast %136 : i32 to index
    %c0_37 = arith.constant 0 : index
    %138 = vector.load %arg2[%137, %c0_37] : memref<32x128xf32, #tpu.memory_space<vmem>>, vector<1x128xf32>
    %139 = arith.index_cast %c19_i32 : i32 to index
    %c0_38 = arith.constant 0 : index
    %140 = vector.load %arg9[%139, %c0_38] : memref<64x128xf32, #tpu.memory_space<vmem>>, vector<1x128xf32>
    tpu.vector_store %arg9[%139, %c0_38], %138 {strides = array<i32>} : memref<64x128xf32, #tpu.memory_space<vmem>>, vector<1x128xf32>,
    %c20_i32 = arith.constant 20 : i32
    %141 = arith.addi %0, %c20_i32 : i32
    %142 = arith.index_cast %141 : i32 to index
    %143 = memref.load %arg1[%142] : memref<128xi32, #tpu.memory_space<smem>>
    %144 = arith.index_cast %143 : i32 to index
    %c0_39 = arith.constant 0 : index
    %145 = vector.load %arg2[%144, %c0_39] : memref<32x128xf32, #tpu.memory_space<vmem>>, vector<1x128xf32>
    %146 = arith.index_cast %c20_i32 : i32 to index
    %c0_40 = arith.constant 0 : index
    %147 = vector.load %arg9[%146, %c0_40] : memref<64x128xf32, #tpu.memory_space<vmem>>, vector<1x128xf32>
    tpu.vector_store %arg9[%146, %c0_40], %145 {strides = array<i32>} : memref<64x128xf32, #tpu.memory_space<vmem>>, vector<1x128xf32>,
    %c21_i32 = arith.constant 21 : i32
    %148 = arith.addi %0, %c21_i32 : i32
    %149 = arith.index_cast %148 : i32 to index
    %150 = memref.load %arg1[%149] : memref<128xi32, #tpu.memory_space<smem>>
    %151 = arith.index_cast %150 : i32 to index
    %c0_41 = arith.constant 0 : index
    %152 = vector.load %arg2[%151, %c0_41] : memref<32x128xf32, #tpu.memory_space<vmem>>, vector<1x128xf32>
    %153 = arith.index_cast %c21_i32 : i32 to index
    %c0_42 = arith.constant 0 : index
    %154 = vector.load %arg9[%153, %c0_42] : memref<64x128xf32, #tpu.memory_space<vmem>>, vector<1x128xf32>
    tpu.vector_store %arg9[%153, %c0_42], %152 {strides = array<i32>} : memref<64x128xf32, #tpu.memory_space<vmem>>, vector<1x128xf32>,
    %c22_i32 = arith.constant 22 : i32
    %155 = arith.addi %0, %c22_i32 : i32
    %156 = arith.index_cast %155 : i32 to index
    %157 = memref.load %arg1[%156] : memref<128xi32, #tpu.memory_space<smem>>
    %158 = arith.index_cast %157 : i32 to index
    %c0_43 = arith.constant 0 : index
    %159 = vector.load %arg2[%158, %c0_43] : memref<32x128xf32, #tpu.memory_space<vmem>>, vector<1x128xf32>
    %160 = arith.index_cast %c22_i32 : i32 to index
    %c0_44 = arith.constant 0 : index
    %161 = vector.load %arg9[%160, %c0_44] : memref<64x128xf32, #tpu.memory_space<vmem>>, vector<1x128xf32>
    tpu.vector_store %arg9[%160, %c0_44], %159 {strides = array<i32>} : memref<64x128xf32, #tpu.memory_space<vmem>>, vector<1x128xf32>,
    %c23_i32 = arith.constant 23 : i32
    %162 = arith.addi %0, %c23_i32 : i32
    %163 = arith.index_cast %162 : i32 to index
    %164 = memref.load %arg1[%163] : memref<128xi32, #tpu.memory_space<smem>>
    %165 = arith.index_cast %164 : i32 to index
    %c0_45 = arith.constant 0 : index
    %166 = vector.load %arg2[%165, %c0_45] : memref<32x128xf32, #tpu.memory_space<vmem>>, vector<1x128xf32>
    %167 = arith.index_cast %c23_i32 : i32 to index
    %c0_46 = arith.constant 0 : index
    %168 = vector.load %arg9[%167, %c0_46] : memref<64x128xf32, #tpu.memory_space<vmem>>, vector<1x128xf32>
    tpu.vector_store %arg9[%167, %c0_46], %166 {strides = array<i32>} : memref<64x128xf32, #tpu.memory_space<vmem>>, vector<1x128xf32>,
    %c24_i32 = arith.constant 24 : i32
    %169 = arith.addi %0, %c24_i32 : i32
    %170 = arith.index_cast %169 : i32 to index
    %171 = memref.load %arg1[%170] : memref<128xi32, #tpu.memory_space<smem>>
    %172 = arith.index_cast %171 : i32 to index
    %c0_47 = arith.constant 0 : index
    %173 = vector.load %arg2[%172, %c0_47] : memref<32x128xf32, #tpu.memory_space<vmem>>, vector<1x128xf32>
    %174 = arith.index_cast %c24_i32 : i32 to index
    %c0_48 = arith.constant 0 : index
    %175 = vector.load %arg9[%174, %c0_48] : memref<64x128xf32, #tpu.memory_space<vmem>>, vector<1x128xf32>
    tpu.vector_store %arg9[%174, %c0_48], %173 {strides = array<i32>} : memref<64x128xf32, #tpu.memory_space<vmem>>, vector<1x128xf32>,
    %c25_i32 = arith.constant 25 : i32
    %176 = arith.addi %0, %c25_i32 : i32
    %177 = arith.index_cast %176 : i32 to index
    %178 = memref.load %arg1[%177] : memref<128xi32, #tpu.memory_space<smem>>
    %179 = arith.index_cast %178 : i32 to index
    %c0_49 = arith.constant 0 : index
    %180 = vector.load %arg2[%179, %c0_49] : memref<32x128xf32, #tpu.memory_space<vmem>>, vector<1x128xf32>
    %181 = arith.index_cast %c25_i32 : i32 to index
    %c0_50 = arith.constant 0 : index
    %182 = vector.load %arg9[%181, %c0_50] : memref<64x128xf32, #tpu.memory_space<vmem>>, vector<1x128xf32>
    tpu.vector_store %arg9[%181, %c0_50], %180 {strides = array<i32>} : memref<64x128xf32, #tpu.memory_space<vmem>>, vector<1x128xf32>,
    %c26_i32 = arith.constant 26 : i32
    %183 = arith.addi %0, %c26_i32 : i32
    %184 = arith.index_cast %183 : i32 to index
    %185 = memref.load %arg1[%184] : memref<128xi32, #tpu.memory_space<smem>>
    %186 = arith.index_cast %185 : i32 to index
    %c0_51 = arith.constant 0 : index
    %187 = vector.load %arg2[%186, %c0_51] : memref<32x128xf32, #tpu.memory_space<vmem>>, vector<1x128xf32>
    %188 = arith.index_cast %c26_i32 : i32 to index
    %c0_52 = arith.constant 0 : index
    %189 = vector.load %arg9[%188, %c0_52] : memref<64x128xf32, #tpu.memory_space<vmem>>, vector<1x128xf32>
    tpu.vector_store %arg9[%188, %c0_52], %187 {strides = array<i32>} : memref<64x128xf32, #tpu.memory_space<vmem>>, vector<1x128xf32>,
    %c27_i32 = arith.constant 27 : i32
    %190 = arith.addi %0, %c27_i32 : i32
    %191 = arith.index_cast %190 : i32 to index
    %192 = memref.load %arg1[%191] : memref<128xi32, #tpu.memory_space<smem>>
    %193 = arith.index_cast %192 : i32 to index
    %c0_53 = arith.constant 0 : index
    %194 = vector.load %arg2[%193, %c0_53] : memref<32x128xf32, #tpu.memory_space<vmem>>, vector<1x128xf32>
    %195 = arith.index_cast %c27_i32 : i32 to index
    %c0_54 = arith.constant 0 : index
    %196 = vector.load %arg9[%195, %c0_54] : memref<64x128xf32, #tpu.memory_space<vmem>>, vector<1x128xf32>
    tpu.vector_store %arg9[%195, %c0_54], %194 {strides = array<i32>} : memref<64x128xf32, #tpu.memory_space<vmem>>, vector<1x128xf32>,
    %c28_i32 = arith.constant 28 : i32
    %197 = arith.addi %0, %c28_i32 : i32
    %198 = arith.index_cast %197 : i32 to index
    %199 = memref.load %arg1[%198] : memref<128xi32, #tpu.memory_space<smem>>
    %200 = arith.index_cast %199 : i32 to index
    %c0_55 = arith.constant 0 : index
    %201 = vector.load %arg2[%200, %c0_55] : memref<32x128xf32, #tpu.memory_space<vmem>>, vector<1x128xf32>
    %202 = arith.index_cast %c28_i32 : i32 to index
    %c0_56 = arith.constant 0 : index
    %203 = vector.load %arg9[%202, %c0_56] : memref<64x128xf32, #tpu.memory_space<vmem>>, vector<1x128xf32>
    tpu.vector_store %arg9[%202, %c0_56], %201 {strides = array<i32>} : memref<64x128xf32, #tpu.memory_space<vmem>>, vector<1x128xf32>,
    %c29_i32 = arith.constant 29 : i32
    %204 = arith.addi %0, %c29_i32 : i32
    %205 = arith.index_cast %204 : i32 to index
    %206 = memref.load %arg1[%205] : memref<128xi32, #tpu.memory_space<smem>>
    %207 = arith.index_cast %206 : i32 to index
    %c0_57 = arith.constant 0 : index
    %208 = vector.load %arg2[%207, %c0_57] : memref<32x128xf32, #tpu.memory_space<vmem>>, vector<1x128xf32>
    %209 = arith.index_cast %c29_i32 : i32 to index
    %c0_58 = arith.constant 0 : index
    %210 = vector.load %arg9[%209, %c0_58] : memref<64x128xf32, #tpu.memory_space<vmem>>, vector<1x128xf32>
    tpu.vector_store %arg9[%209, %c0_58], %208 {strides = array<i32>} : memref<64x128xf32, #tpu.memory_space<vmem>>, vector<1x128xf32>,
    %c30_i32 = arith.constant 30 : i32
    %211 = arith.addi %0, %c30_i32 : i32
    %212 = arith.index_cast %211 : i32 to index
    %213 = memref.load %arg1[%212] : memref<128xi32, #tpu.memory_space<smem>>
    %214 = arith.index_cast %213 : i32 to index
    %c0_59 = arith.constant 0 : index
    %215 = vector.load %arg2[%214, %c0_59] : memref<32x128xf32, #tpu.memory_space<vmem>>, vector<1x128xf32>
    %216 = arith.index_cast %c30_i32 : i32 to index
    %c0_60 = arith.constant 0 : index
    %217 = vector.load %arg9[%216, %c0_60] : memref<64x128xf32, #tpu.memory_space<vmem>>, vector<1x128xf32>
    tpu.vector_store %arg9[%216, %c0_60], %215 {strides = array<i32>} : memref<64x128xf32, #tpu.memory_space<vmem>>, vector<1x128xf32>,
    %c31_i32 = arith.constant 31 : i32
    %218 = arith.addi %0, %c31_i32 : i32
    %219 = arith.index_cast %218 : i32 to index
    %220 = memref.load %arg1[%219] : memref<128xi32, #tpu.memory_space<smem>>
    %221 = arith.index_cast %220 : i32 to index
    %c0_61 = arith.constant 0 : index
    %222 = vector.load %arg2[%221, %c0_61] : memref<32x128xf32, #tpu.memory_space<vmem>>, vector<1x128xf32>
    %223 = arith.index_cast %c31_i32 : i32 to index
    %c0_62 = arith.constant 0 : index
    %224 = vector.load %arg9[%223, %c0_62] : memref<64x128xf32, #tpu.memory_space<vmem>>, vector<1x128xf32>
    tpu.vector_store %arg9[%223, %c0_62], %222 {strides = array<i32>} : memref<64x128xf32, #tpu.memory_space<vmem>>, vector<1x128xf32>,
    %c32_i32 = arith.constant 32 : i32
    %225 = arith.addi %0, %c32_i32 : i32
    %226 = arith.index_cast %225 : i32 to index
    %227 = memref.load %arg1[%226] : memref<128xi32, #tpu.memory_space<smem>>
    %228 = arith.index_cast %227 : i32 to index
    %c0_63 = arith.constant 0 : index
    %229 = vector.load %arg2[%228, %c0_63] : memref<32x128xf32, #tpu.memory_space<vmem>>, vector<1x128xf32>
    %230 = arith.index_cast %c32_i32 : i32 to index
    %c0_64 = arith.constant 0 : index
    %231 = vector.load %arg9[%230, %c0_64] : memref<64x128xf32, #tpu.memory_space<vmem>>, vector<1x128xf32>
    tpu.vector_store %arg9[%230, %c0_64], %229 {strides = array<i32>} : memref<64x128xf32, #tpu.memory_space<vmem>>, vector<1x128xf32>,
    %c33_i32 = arith.constant 33 : i32
    %232 = arith.addi %0, %c33_i32 : i32
    %233 = arith.index_cast %232 : i32 to index
    %234 = memref.load %arg1[%233] : memref<128xi32, #tpu.memory_space<smem>>
    %235 = arith.index_cast %234 : i32 to index
    %c0_65 = arith.constant 0 : index
    %236 = vector.load %arg2[%235, %c0_65] : memref<32x128xf32, #tpu.memory_space<vmem>>, vector<1x128xf32>
    %237 = arith.index_cast %c33_i32 : i32 to index
    %c0_66 = arith.constant 0 : index
    %238 = vector.load %arg9[%237, %c0_66] : memref<64x128xf32, #tpu.memory_space<vmem>>, vector<1x128xf32>
    tpu.vector_store %arg9[%237, %c0_66], %236 {strides = array<i32>} : memref<64x128xf32, #tpu.memory_space<vmem>>, vector<1x128xf32>,
    %c34_i32 = arith.constant 34 : i32
    %239 = arith.addi %0, %c34_i32 : i32
    %240 = arith.index_cast %239 : i32 to index
    %241 = memref.load %arg1[%240] : memref<128xi32, #tpu.memory_space<smem>>
    %242 = arith.index_cast %241 : i32 to index
    %c0_67 = arith.constant 0 : index
    %243 = vector.load %arg2[%242, %c0_67] : memref<32x128xf32, #tpu.memory_space<vmem>>, vector<1x128xf32>
    %244 = arith.index_cast %c34_i32 : i32 to index
    %c0_68 = arith.constant 0 : index
    %245 = vector.load %arg9[%244, %c0_68] : memref<64x128xf32, #tpu.memory_space<vmem>>, vector<1x128xf32>
    tpu.vector_store %arg9[%244, %c0_68], %243 {strides = array<i32>} : memref<64x128xf32, #tpu.memory_space<vmem>>, vector<1x128xf32>,
    %c35_i32 = arith.constant 35 : i32
    %246 = arith.addi %0, %c35_i32 : i32
    %247 = arith.index_cast %246 : i32 to index
    %248 = memref.load %arg1[%247] : memref<128xi32, #tpu.memory_space<smem>>
    %249 = arith.index_cast %248 : i32 to index
    %c0_69 = arith.constant 0 : index
    %250 = vector.load %arg2[%249, %c0_69] : memref<32x128xf32, #tpu.memory_space<vmem>>, vector<1x128xf32>
    %251 = arith.index_cast %c35_i32 : i32 to index
    %c0_70 = arith.constant 0 : index
    %252 = vector.load %arg9[%251, %c0_70] : memref<64x128xf32, #tpu.memory_space<vmem>>, vector<1x128xf32>
    tpu.vector_store %arg9[%251, %c0_70], %250 {strides = array<i32>} : memref<64x128xf32, #tpu.memory_space<vmem>>, vector<1x128xf32>,
    %c36_i32 = arith.constant 36 : i32
    %253 = arith.addi %0, %c36_i32 : i32
    %254 = arith.index_cast %253 : i32 to index
    %255 = memref.load %arg1[%254] : memref<128xi32, #tpu.memory_space<smem>>
    %256 = arith.index_cast %255 : i32 to index
    %c0_71 = arith.constant 0 : index
    %257 = vector.load %arg2[%256, %c0_71] : memref<32x128xf32, #tpu.memory_space<vmem>>, vector<1x128xf32>
    %258 = arith.index_cast %c36_i32 : i32 to index
    %c0_72 = arith.constant 0 : index
    %259 = vector.load %arg9[%258, %c0_72] : memref<64x128xf32, #tpu.memory_space<vmem>>, vector<1x128xf32>
    tpu.vector_store %arg9[%258, %c0_72], %257 {strides = array<i32>} : memref<64x128xf32, #tpu.memory_space<vmem>>, vector<1x128xf32>,
    %c37_i32 = arith.constant 37 : i32
    %260 = arith.addi %0, %c37_i32 : i32
    %261 = arith.index_cast %260 : i32 to index
    %262 = memref.load %arg1[%261] : memref<128xi32, #tpu.memory_space<smem>>
    %263 = arith.index_cast %262 : i32 to index
    %c0_73 = arith.constant 0 : index
    %264 = vector.load %arg2[%263, %c0_73] : memref<32x128xf32, #tpu.memory_space<vmem>>, vector<1x128xf32>
    %265 = arith.index_cast %c37_i32 : i32 to index
    %c0_74 = arith.constant 0 : index
    %266 = vector.load %arg9[%265, %c0_74] : memref<64x128xf32, #tpu.memory_space<vmem>>, vector<1x128xf32>
    tpu.vector_store %arg9[%265, %c0_74], %264 {strides = array<i32>} : memref<64x128xf32, #tpu.memory_space<vmem>>, vector<1x128xf32>,
    %c38_i32 = arith.constant 38 : i32
    %267 = arith.addi %0, %c38_i32 : i32
    %268 = arith.index_cast %267 : i32 to index
    %269 = memref.load %arg1[%268] : memref<128xi32, #tpu.memory_space<smem>>
    %270 = arith.index_cast %269 : i32 to index
    %c0_75 = arith.constant 0 : index
    %271 = vector.load %arg2[%270, %c0_75] : memref<32x128xf32, #tpu.memory_space<vmem>>, vector<1x128xf32>
    %272 = arith.index_cast %c38_i32 : i32 to index
    %c0_76 = arith.constant 0 : index
    %273 = vector.load %arg9[%272, %c0_76] : memref<64x128xf32, #tpu.memory_space<vmem>>, vector<1x128xf32>
    tpu.vector_store %arg9[%272, %c0_76], %271 {strides = array<i32>} : memref<64x128xf32, #tpu.memory_space<vmem>>, vector<1x128xf32>,
    %c39_i32 = arith.constant 39 : i32
    %274 = arith.addi %0, %c39_i32 : i32
    %275 = arith.index_cast %274 : i32 to index
    %276 = memref.load %arg1[%275] : memref<128xi32, #tpu.memory_space<smem>>
    %277 = arith.index_cast %276 : i32 to index
    %c0_77 = arith.constant 0 : index
    %278 = vector.load %arg2[%277, %c0_77] : memref<32x128xf32, #tpu.memory_space<vmem>>, vector<1x128xf32>
    %279 = arith.index_cast %c39_i32 : i32 to index
    %c0_78 = arith.constant 0 : index
    %280 = vector.load %arg9[%279, %c0_78] : memref<64x128xf32, #tpu.memory_space<vmem>>, vector<1x128xf32>
    tpu.vector_store %arg9[%279, %c0_78], %278 {strides = array<i32>} : memref<64x128xf32, #tpu.memory_space<vmem>>, vector<1x128xf32>,
    %c40_i32 = arith.constant 40 : i32
    %281 = arith.addi %0, %c40_i32 : i32
    %282 = arith.index_cast %281 : i32 to index
    %283 = memref.load %arg1[%282] : memref<128xi32, #tpu.memory_space<smem>>
    %284 = arith.index_cast %283 : i32 to index
    %c0_79 = arith.constant 0 : index
    %285 = vector.load %arg2[%284, %c0_79] : memref<32x128xf32, #tpu.memory_space<vmem>>, vector<1x128xf32>
    %286 = arith.index_cast %c40_i32 : i32 to index
    %c0_80 = arith.constant 0 : index
    %287 = vector.load %arg9[%286, %c0_80] : memref<64x128xf32, #tpu.memory_space<vmem>>, vector<1x128xf32>
    tpu.vector_store %arg9[%286, %c0_80], %285 {strides = array<i32>} : memref<64x128xf32, #tpu.memory_space<vmem>>, vector<1x128xf32>,
    %c41_i32 = arith.constant 41 : i32
    %288 = arith.addi %0, %c41_i32 : i32
    %289 = arith.index_cast %288 : i32 to index
    %290 = memref.load %arg1[%289] : memref<128xi32, #tpu.memory_space<smem>>
    %291 = arith.index_cast %290 : i32 to index
    %c0_81 = arith.constant 0 : index
    %292 = vector.load %arg2[%291, %c0_81] : memref<32x128xf32, #tpu.memory_space<vmem>>, vector<1x128xf32>
    %293 = arith.index_cast %c41_i32 : i32 to index
    %c0_82 = arith.constant 0 : index
    %294 = vector.load %arg9[%293, %c0_82] : memref<64x128xf32, #tpu.memory_space<vmem>>, vector<1x128xf32>
    tpu.vector_store %arg9[%293, %c0_82], %292 {strides = array<i32>} : memref<64x128xf32, #tpu.memory_space<vmem>>, vector<1x128xf32>,
    %c42_i32 = arith.constant 42 : i32
    %295 = arith.addi %0, %c42_i32 : i32
    %296 = arith.index_cast %295 : i32 to index
    %297 = memref.load %arg1[%296] : memref<128xi32, #tpu.memory_space<smem>>
    %298 = arith.index_cast %297 : i32 to index
    %c0_83 = arith.constant 0 : index
    %299 = vector.load %arg2[%298, %c0_83] : memref<32x128xf32, #tpu.memory_space<vmem>>, vector<1x128xf32>
    %300 = arith.index_cast %c42_i32 : i32 to index
    %c0_84 = arith.constant 0 : index
    %301 = vector.load %arg9[%300, %c0_84] : memref<64x128xf32, #tpu.memory_space<vmem>>, vector<1x128xf32>
    tpu.vector_store %arg9[%300, %c0_84], %299 {strides = array<i32>} : memref<64x128xf32, #tpu.memory_space<vmem>>, vector<1x128xf32>,
    %c43_i32 = arith.constant 43 : i32
    %302 = arith.addi %0, %c43_i32 : i32
    %303 = arith.index_cast %302 : i32 to index
    %304 = memref.load %arg1[%303] : memref<128xi32, #tpu.memory_space<smem>>
    %305 = arith.index_cast %304 : i32 to index
    %c0_85 = arith.constant 0 : index
    %306 = vector.load %arg2[%305, %c0_85] : memref<32x128xf32, #tpu.memory_space<vmem>>, vector<1x128xf32>
    %307 = arith.index_cast %c43_i32 : i32 to index
    %c0_86 = arith.constant 0 : index
    %308 = vector.load %arg9[%307, %c0_86] : memref<64x128xf32, #tpu.memory_space<vmem>>, vector<1x128xf32>
    tpu.vector_store %arg9[%307, %c0_86], %306 {strides = array<i32>} : memref<64x128xf32, #tpu.memory_space<vmem>>, vector<1x128xf32>,
    %c44_i32 = arith.constant 44 : i32
    %309 = arith.addi %0, %c44_i32 : i32
    %310 = arith.index_cast %309 : i32 to index
    %311 = memref.load %arg1[%310] : memref<128xi32, #tpu.memory_space<smem>>
    %312 = arith.index_cast %311 : i32 to index
    %c0_87 = arith.constant 0 : index
    %313 = vector.load %arg2[%312, %c0_87] : memref<32x128xf32, #tpu.memory_space<vmem>>, vector<1x128xf32>
    %314 = arith.index_cast %c44_i32 : i32 to index
    %c0_88 = arith.constant 0 : index
    %315 = vector.load %arg9[%314, %c0_88] : memref<64x128xf32, #tpu.memory_space<vmem>>, vector<1x128xf32>
    tpu.vector_store %arg9[%314, %c0_88], %313 {strides = array<i32>} : memref<64x128xf32, #tpu.memory_space<vmem>>, vector<1x128xf32>,
    %c45_i32 = arith.constant 45 : i32
    %316 = arith.addi %0, %c45_i32 : i32
    %317 = arith.index_cast %316 : i32 to index
    %318 = memref.load %arg1[%317] : memref<128xi32, #tpu.memory_space<smem>>
    %319 = arith.index_cast %318 : i32 to index
    %c0_89 = arith.constant 0 : index
    %320 = vector.load %arg2[%319, %c0_89] : memref<32x128xf32, #tpu.memory_space<vmem>>, vector<1x128xf32>
    %321 = arith.index_cast %c45_i32 : i32 to index
    %c0_90 = arith.constant 0 : index
    %322 = vector.load %arg9[%321, %c0_90] : memref<64x128xf32, #tpu.memory_space<vmem>>, vector<1x128xf32>
    tpu.vector_store %arg9[%321, %c0_90], %320 {strides = array<i32>} : memref<64x128xf32, #tpu.memory_space<vmem>>, vector<1x128xf32>,
    %c46_i32 = arith.constant 46 : i32
    %323 = arith.addi %0, %c46_i32 : i32
    %324 = arith.index_cast %323 : i32 to index
    %325 = memref.load %arg1[%324] : memref<128xi32, #tpu.memory_space<smem>>
    %326 = arith.index_cast %325 : i32 to index
    %c0_91 = arith.constant 0 : index
    %327 = vector.load %arg2[%326, %c0_91] : memref<32x128xf32, #tpu.memory_space<vmem>>, vector<1x128xf32>
    %328 = arith.index_cast %c46_i32 : i32 to index
    %c0_92 = arith.constant 0 : index
    %329 = vector.load %arg9[%328, %c0_92] : memref<64x128xf32, #tpu.memory_space<vmem>>, vector<1x128xf32>
    tpu.vector_store %arg9[%328, %c0_92], %327 {strides = array<i32>} : memref<64x128xf32, #tpu.memory_space<vmem>>, vector<1x128xf32>,
    %c47_i32 = arith.constant 47 : i32
    %330 = arith.addi %0, %c47_i32 : i32
    %331 = arith.index_cast %330 : i32 to index
    %332 = memref.load %arg1[%331] : memref<128xi32, #tpu.memory_space<smem>>
    %333 = arith.index_cast %332 : i32 to index
    %c0_93 = arith.constant 0 : index
    %334 = vector.load %arg2[%333, %c0_93] : memref<32x128xf32, #tpu.memory_space<vmem>>, vector<1x128xf32>
    %335 = arith.index_cast %c47_i32 : i32 to index
    %c0_94 = arith.constant 0 : index
    %336 = vector.load %arg9[%335, %c0_94] : memref<64x128xf32, #tpu.memory_space<vmem>>, vector<1x128xf32>
    tpu.vector_store %arg9[%335, %c0_94], %334 {strides = array<i32>} : memref<64x128xf32, #tpu.memory_space<vmem>>, vector<1x128xf32>,
    %c48_i32 = arith.constant 48 : i32
    %337 = arith.addi %0, %c48_i32 : i32
    %338 = arith.index_cast %337 : i32 to index
    %339 = memref.load %arg1[%338] : memref<128xi32, #tpu.memory_space<smem>>
    %340 = arith.index_cast %339 : i32 to index
    %c0_95 = arith.constant 0 : index
    %341 = vector.load %arg2[%340, %c0_95] : memref<32x128xf32, #tpu.memory_space<vmem>>, vector<1x128xf32>
    %342 = arith.index_cast %c48_i32 : i32 to index
    %c0_96 = arith.constant 0 : index
    %343 = vector.load %arg9[%342, %c0_96] : memref<64x128xf32, #tpu.memory_space<vmem>>, vector<1x128xf32>
    tpu.vector_store %arg9[%342, %c0_96], %341 {strides = array<i32>} : memref<64x128xf32, #tpu.memory_space<vmem>>, vector<1x128xf32>,
    %c49_i32 = arith.constant 49 : i32
    %344 = arith.addi %0, %c49_i32 : i32
    %345 = arith.index_cast %344 : i32 to index
    %346 = memref.load %arg1[%345] : memref<128xi32, #tpu.memory_space<smem>>
    %347 = arith.index_cast %346 : i32 to index
    %c0_97 = arith.constant 0 : index
    %348 = vector.load %arg2[%347, %c0_97] : memref<32x128xf32, #tpu.memory_space<vmem>>, vector<1x128xf32>
    %349 = arith.index_cast %c49_i32 : i32 to index
    %c0_98 = arith.constant 0 : index
    %350 = vector.load %arg9[%349, %c0_98] : memref<64x128xf32, #tpu.memory_space<vmem>>, vector<1x128xf32>
    tpu.vector_store %arg9[%349, %c0_98], %348 {strides = array<i32>} : memref<64x128xf32, #tpu.memory_space<vmem>>, vector<1x128xf32>,
    %c50_i32 = arith.constant 50 : i32
    %351 = arith.addi %0, %c50_i32 : i32
    %352 = arith.index_cast %351 : i32 to index
    %353 = memref.load %arg1[%352] : memref<128xi32, #tpu.memory_space<smem>>
    %354 = arith.index_cast %353 : i32 to index
    %c0_99 = arith.constant 0 : index
    %355 = vector.load %arg2[%354, %c0_99] : memref<32x128xf32, #tpu.memory_space<vmem>>, vector<1x128xf32>
    %356 = arith.index_cast %c50_i32 : i32 to index
    %c0_100 = arith.constant 0 : index
    %357 = vector.load %arg9[%356, %c0_100] : memref<64x128xf32, #tpu.memory_space<vmem>>, vector<1x128xf32>
    tpu.vector_store %arg9[%356, %c0_100], %355 {strides = array<i32>} : memref<64x128xf32, #tpu.memory_space<vmem>>, vector<1x128xf32>,
    %c51_i32 = arith.constant 51 : i32
    %358 = arith.addi %0, %c51_i32 : i32
    %359 = arith.index_cast %358 : i32 to index
    %360 = memref.load %arg1[%359] : memref<128xi32, #tpu.memory_space<smem>>
    %361 = arith.index_cast %360 : i32 to index
    %c0_101 = arith.constant 0 : index
    %362 = vector.load %arg2[%361, %c0_101] : memref<32x128xf32, #tpu.memory_space<vmem>>, vector<1x128xf32>
    %363 = arith.index_cast %c51_i32 : i32 to index
    %c0_102 = arith.constant 0 : index
    %364 = vector.load %arg9[%363, %c0_102] : memref<64x128xf32, #tpu.memory_space<vmem>>, vector<1x128xf32>
    tpu.vector_store %arg9[%363, %c0_102], %362 {strides = array<i32>} : memref<64x128xf32, #tpu.memory_space<vmem>>, vector<1x128xf32>,
    %c52_i32 = arith.constant 52 : i32
    %365 = arith.addi %0, %c52_i32 : i32
    %366 = arith.index_cast %365 : i32 to index
    %367 = memref.load %arg1[%366] : memref<128xi32, #tpu.memory_space<smem>>
    %368 = arith.index_cast %367 : i32 to index
    %c0_103 = arith.constant 0 : index
    %369 = vector.load %arg2[%368, %c0_103] : memref<32x128xf32, #tpu.memory_space<vmem>>, vector<1x128xf32>
    %370 = arith.index_cast %c52_i32 : i32 to index
    %c0_104 = arith.constant 0 : index
    %371 = vector.load %arg9[%370, %c0_104] : memref<64x128xf32, #tpu.memory_space<vmem>>, vector<1x128xf32>
    tpu.vector_store %arg9[%370, %c0_104], %369 {strides = array<i32>} : memref<64x128xf32, #tpu.memory_space<vmem>>, vector<1x128xf32>,
    %c53_i32 = arith.constant 53 : i32
    %372 = arith.addi %0, %c53_i32 : i32
    %373 = arith.index_cast %372 : i32 to index
    %374 = memref.load %arg1[%373] : memref<128xi32, #tpu.memory_space<smem>>
    %375 = arith.index_cast %374 : i32 to index
    %c0_105 = arith.constant 0 : index
    %376 = vector.load %arg2[%375, %c0_105] : memref<32x128xf32, #tpu.memory_space<vmem>>, vector<1x128xf32>
    %377 = arith.index_cast %c53_i32 : i32 to index
    %c0_106 = arith.constant 0 : index
    %378 = vector.load %arg9[%377, %c0_106] : memref<64x128xf32, #tpu.memory_space<vmem>>, vector<1x128xf32>
    tpu.vector_store %arg9[%377, %c0_106], %376 {strides = array<i32>} : memref<64x128xf32, #tpu.memory_space<vmem>>, vector<1x128xf32>,
    %c54_i32 = arith.constant 54 : i32
    %379 = arith.addi %0, %c54_i32 : i32
    %380 = arith.index_cast %379 : i32 to index
    %381 = memref.load %arg1[%380] : memref<128xi32, #tpu.memory_space<smem>>
    %382 = arith.index_cast %381 : i32 to index
    %c0_107 = arith.constant 0 : index
    %383 = vector.load %arg2[%382, %c0_107] : memref<32x128xf32, #tpu.memory_space<vmem>>, vector<1x128xf32>
    %384 = arith.index_cast %c54_i32 : i32 to index
    %c0_108 = arith.constant 0 : index
    %385 = vector.load %arg9[%384, %c0_108] : memref<64x128xf32, #tpu.memory_space<vmem>>, vector<1x128xf32>
    tpu.vector_store %arg9[%384, %c0_108], %383 {strides = array<i32>} : memref<64x128xf32, #tpu.memory_space<vmem>>, vector<1x128xf32>,
    %c55_i32 = arith.constant 55 : i32
    %386 = arith.addi %0, %c55_i32 : i32
    %387 = arith.index_cast %386 : i32 to index
    %388 = memref.load %arg1[%387] : memref<128xi32, #tpu.memory_space<smem>>
    %389 = arith.index_cast %388 : i32 to index
    %c0_109 = arith.constant 0 : index
    %390 = vector.load %arg2[%389, %c0_109] : memref<32x128xf32, #tpu.memory_space<vmem>>, vector<1x128xf32>
    %391 = arith.index_cast %c55_i32 : i32 to index
    %c0_110 = arith.constant 0 : index
    %392 = vector.load %arg9[%391, %c0_110] : memref<64x128xf32, #tpu.memory_space<vmem>>, vector<1x128xf32>
    tpu.vector_store %arg9[%391, %c0_110], %390 {strides = array<i32>} : memref<64x128xf32, #tpu.memory_space<vmem>>, vector<1x128xf32>,
    %c56_i32 = arith.constant 56 : i32
    %393 = arith.addi %0, %c56_i32 : i32
    %394 = arith.index_cast %393 : i32 to index
    %395 = memref.load %arg1[%394] : memref<128xi32, #tpu.memory_space<smem>>
    %396 = arith.index_cast %395 : i32 to index
    %c0_111 = arith.constant 0 : index
    %397 = vector.load %arg2[%396, %c0_111] : memref<32x128xf32, #tpu.memory_space<vmem>>, vector<1x128xf32>
    %398 = arith.index_cast %c56_i32 : i32 to index
    %c0_112 = arith.constant 0 : index
    %399 = vector.load %arg9[%398, %c0_112] : memref<64x128xf32, #tpu.memory_space<vmem>>, vector<1x128xf32>
    tpu.vector_store %arg9[%398, %c0_112], %397 {strides = array<i32>} : memref<64x128xf32, #tpu.memory_space<vmem>>, vector<1x128xf32>,
    %c57_i32 = arith.constant 57 : i32
    %400 = arith.addi %0, %c57_i32 : i32
    %401 = arith.index_cast %400 : i32 to index
    %402 = memref.load %arg1[%401] : memref<128xi32, #tpu.memory_space<smem>>
    %403 = arith.index_cast %402 : i32 to index
    %c0_113 = arith.constant 0 : index
    %404 = vector.load %arg2[%403, %c0_113] : memref<32x128xf32, #tpu.memory_space<vmem>>, vector<1x128xf32>
    %405 = arith.index_cast %c57_i32 : i32 to index
    %c0_114 = arith.constant 0 : index
    %406 = vector.load %arg9[%405, %c0_114] : memref<64x128xf32, #tpu.memory_space<vmem>>, vector<1x128xf32>
    tpu.vector_store %arg9[%405, %c0_114], %404 {strides = array<i32>} : memref<64x128xf32, #tpu.memory_space<vmem>>, vector<1x128xf32>,
    %c58_i32 = arith.constant 58 : i32
    %407 = arith.addi %0, %c58_i32 : i32
    %408 = arith.index_cast %407 : i32 to index
    %409 = memref.load %arg1[%408] : memref<128xi32, #tpu.memory_space<smem>>
    %410 = arith.index_cast %409 : i32 to index
    %c0_115 = arith.constant 0 : index
    %411 = vector.load %arg2[%410, %c0_115] : memref<32x128xf32, #tpu.memory_space<vmem>>, vector<1x128xf32>
    %412 = arith.index_cast %c58_i32 : i32 to index
    %c0_116 = arith.constant 0 : index
    %413 = vector.load %arg9[%412, %c0_116] : memref<64x128xf32, #tpu.memory_space<vmem>>, vector<1x128xf32>
    tpu.vector_store %arg9[%412, %c0_116], %411 {strides = array<i32>} : memref<64x128xf32, #tpu.memory_space<vmem>>, vector<1x128xf32>,
    %c59_i32 = arith.constant 59 : i32
    %414 = arith.addi %0, %c59_i32 : i32
    %415 = arith.index_cast %414 : i32 to index
    %416 = memref.load %arg1[%415] : memref<128xi32, #tpu.memory_space<smem>>
    %417 = arith.index_cast %416 : i32 to index
    %c0_117 = arith.constant 0 : index
    %418 = vector.load %arg2[%417, %c0_117] : memref<32x128xf32, #tpu.memory_space<vmem>>, vector<1x128xf32>
    %419 = arith.index_cast %c59_i32 : i32 to index
    %c0_118 = arith.constant 0 : index
    %420 = vector.load %arg9[%419, %c0_118] : memref<64x128xf32, #tpu.memory_space<vmem>>, vector<1x128xf32>
    tpu.vector_store %arg9[%419, %c0_118], %418 {strides = array<i32>} : memref<64x128xf32, #tpu.memory_space<vmem>>, vector<1x128xf32>,
    %c60_i32 = arith.constant 60 : i32
    %421 = arith.addi %0, %c60_i32 : i32
    %422 = arith.index_cast %421 : i32 to index
    %423 = memref.load %arg1[%422] : memref<128xi32, #tpu.memory_space<smem>>
    %424 = arith.index_cast %423 : i32 to index
    %c0_119 = arith.constant 0 : index
    %425 = vector.load %arg2[%424, %c0_119] : memref<32x128xf32, #tpu.memory_space<vmem>>, vector<1x128xf32>
    %426 = arith.index_cast %c60_i32 : i32 to index
    %c0_120 = arith.constant 0 : index
    %427 = vector.load %arg9[%426, %c0_120] : memref<64x128xf32, #tpu.memory_space<vmem>>, vector<1x128xf32>
    tpu.vector_store %arg9[%426, %c0_120], %425 {strides = array<i32>} : memref<64x128xf32, #tpu.memory_space<vmem>>, vector<1x128xf32>,
    %c61_i32 = arith.constant 61 : i32
    %428 = arith.addi %0, %c61_i32 : i32
    %429 = arith.index_cast %428 : i32 to index
    %430 = memref.load %arg1[%429] : memref<128xi32, #tpu.memory_space<smem>>
    %431 = arith.index_cast %430 : i32 to index
    %c0_121 = arith.constant 0 : index
    %432 = vector.load %arg2[%431, %c0_121] : memref<32x128xf32, #tpu.memory_space<vmem>>, vector<1x128xf32>
    %433 = arith.index_cast %c61_i32 : i32 to index
    %c0_122 = arith.constant 0 : index
    %434 = vector.load %arg9[%433, %c0_122] : memref<64x128xf32, #tpu.memory_space<vmem>>, vector<1x128xf32>
    tpu.vector_store %arg9[%433, %c0_122], %432 {strides = array<i32>} : memref<64x128xf32, #tpu.memory_space<vmem>>, vector<1x128xf32>,
    %c62_i32 = arith.constant 62 : i32
    %435 = arith.addi %0, %c62_i32 : i32
    %436 = arith.index_cast %435 : i32 to index
    %437 = memref.load %arg1[%436] : memref<128xi32, #tpu.memory_space<smem>>
    %438 = arith.index_cast %437 : i32 to index
    %c0_123 = arith.constant 0 : index
    %439 = vector.load %arg2[%438, %c0_123] : memref<32x128xf32, #tpu.memory_space<vmem>>, vector<1x128xf32>
    %440 = arith.index_cast %c62_i32 : i32 to index
    %c0_124 = arith.constant 0 : index
    %441 = vector.load %arg9[%440, %c0_124] : memref<64x128xf32, #tpu.memory_space<vmem>>, vector<1x128xf32>
    tpu.vector_store %arg9[%440, %c0_124], %439 {strides = array<i32>} : memref<64x128xf32, #tpu.memory_space<vmem>>, vector<1x128xf32>,
    %c63_i32 = arith.constant 63 : i32
    %442 = arith.addi %0, %c63_i32 : i32
    %443 = arith.index_cast %442 : i32 to index
    %444 = memref.load %arg1[%443] : memref<128xi32, #tpu.memory_space<smem>>
    %445 = arith.index_cast %444 : i32 to index
    %c0_125 = arith.constant 0 : index
    %446 = vector.load %arg2[%445, %c0_125] : memref<32x128xf32, #tpu.memory_space<vmem>>, vector<1x128xf32>
    %447 = arith.index_cast %c63_i32 : i32 to index
    %c0_126 = arith.constant 0 : index
    %448 = vector.load %arg9[%447, %c0_126] : memref<64x128xf32, #tpu.memory_space<vmem>>, vector<1x128xf32>
    tpu.vector_store %arg9[%447, %c0_126], %446 {strides = array<i32>} : memref<64x128xf32, #tpu.memory_space<vmem>>, vector<1x128xf32>,
    %c64_i32_127 = arith.constant 64 : i32
    %c0_128 = arith.constant 0 : index
    %c0_129 = arith.constant 0 : index
    %449 = vector.load %arg9[%c0_128, %c0_129] : memref<64x128xf32, #tpu.memory_space<vmem>>, vector<64x128xf32>
    %450 = arith.truncf %449 : vector<64x128xf32> to vector<64x128xbf16>
    %c0_130 = arith.constant 0 : index
    %c0_131 = arith.constant 0 : index
    %451 = vector.load %arg3[%c0_130, %c0_131] : memref<128x128xbf16, #tpu.memory_space<vmem>>, vector<128x128xbf16>
    %cst = arith.constant dense<0.000000e+00> : vector<64x128xf32>
    %452 = tpu.matmul %450, %451, %cst {dimension_numbers = #tpu.dot_dimension_numbers<[1], [0], [0], [1], [0, 0, 1, 1], [], []>} : vector<64x128xbf16>, vector<128x128xbf16>, vector<64x128xf32> -> vector<64x128xf32>
    %c0_132 = arith.constant 0 : index
    %c0_133 = arith.constant 0 : index
    %453 = vector.load %arg5[%c0_132, %c0_133] : memref<1x128xf32, #tpu.memory_space<vmem>>, vector<1x128xf32>
    %454 = vector.broadcast %453 : vector<1x128xf32> to vector<64x128xf32>
    %455 = arith.addf %452, %454 : vector<64x128xf32>
    %c0_134 = arith.constant 0 : index
    %c0_135 = arith.constant 0 : index
    %456 = vector.load %arg10[%c0_134, %c0_135] : memref<64x128xf32, #tpu.memory_space<vmem>>, vector<64x128xf32>
    tpu.vector_store %arg10[%c0_134, %c0_135], %455 {strides = array<i32>} : memref<64x128xf32, #tpu.memory_space<vmem>>, vector<64x128xf32>,
    %c0_136 = arith.constant 0 : index
    %c0_137 = arith.constant 0 : index
    %457 = vector.load %arg4[%c0_136, %c0_137] : memref<128x128xbf16, #tpu.memory_space<vmem>>, vector<128x128xbf16>
    %c0_138 = arith.constant 0 : index
    %c0_139 = arith.constant 0 : index
    %458 = vector.load %arg10[%c0_138, %c0_139] : memref<64x128xf32, #tpu.memory_space<vmem>>, vector<8x128xf32>
    %459 = math.tanh %458 : vector<8x128xf32>
    %c0_140 = arith.constant 0 : index
    %c0_141 = arith.constant 0 : index
    %460 = vector.load %arg10[%c0_140, %c0_141] : memref<64x128xf32, #tpu.memory_space<vmem>>, vector<8x128xf32>
    tpu.vector_store %arg10[%c0_140, %c0_141], %459 {strides = array<i32>} : memref<64x128xf32, #tpu.memory_space<vmem>>, vector<8x128xf32>,
    %c1_i32_142 = arith.constant 1 : i32
    %c8_i32_143 = arith.constant 8 : i32
    %461 = arith.muli %c1_i32_142, %c8_i32_143 : i32
    %462 = tpu.assume_multiple %461, 8 : i32
    %463 = arith.index_cast %462 : i32 to index
    %c0_144 = arith.constant 0 : index
    %464 = vector.load %arg10[%463, %c0_144] : memref<64x128xf32, #tpu.memory_space<vmem>>, vector<8x128xf32>
    %465 = arith.truncf %459 : vector<8x128xf32> to vector<8x128xbf16>
    %cst_145 = arith.constant dense<0.000000e+00> : vector<8x128xf32>
    %466 = tpu.matmul %465, %457, %cst_145 {dimension_numbers = #tpu.dot_dimension_numbers<[1], [0], [0], [1], [0, 0, 1, 1], [], []>} : vector<8x128xbf16>, vector<128x128xbf16>, vector<8x128xf32> -> vector<8x128xf32>
    %467 = arith.addf %464, %466 : vector<8x128xf32>
    %468 = math.tanh %467 : vector<8x128xf32>
    %469 = arith.index_cast %462 : i32 to index
    %c0_146 = arith.constant 0 : index
    %470 = vector.load %arg10[%469, %c0_146] : memref<64x128xf32, #tpu.memory_space<vmem>>, vector<8x128xf32>
    tpu.vector_store %arg10[%469, %c0_146], %468 {strides = array<i32>} : memref<64x128xf32, #tpu.memory_space<vmem>>, vector<8x128xf32>,
    %c2_i32_147 = arith.constant 2 : i32
    %c8_i32_148 = arith.constant 8 : i32
    %471 = arith.muli %c2_i32_147, %c8_i32_148 : i32
    %472 = tpu.assume_multiple %471, 8 : i32
    %473 = arith.index_cast %472 : i32 to index
    %c0_149 = arith.constant 0 : index
    %474 = vector.load %arg10[%473, %c0_149] : memref<64x128xf32, #tpu.memory_space<vmem>>, vector<8x128xf32>
    %475 = arith.truncf %468 : vector<8x128xf32> to vector<8x128xbf16>
    %cst_150 = arith.constant dense<0.000000e+00> : vector<8x128xf32>
    %476 = tpu.matmul %475, %457, %cst_150 {dimension_numbers = #tpu.dot_dimension_numbers<[1], [0], [0], [1], [0, 0, 1, 1], [], []>} : vector<8x128xbf16>, vector<128x128xbf16>, vector<8x128xf32> -> vector<8x128xf32>
    %477 = arith.addf %474, %476 : vector<8x128xf32>
    %478 = math.tanh %477 : vector<8x128xf32>
    %479 = arith.index_cast %472 : i32 to index
    %c0_151 = arith.constant 0 : index
    %480 = vector.load %arg10[%479, %c0_151] : memref<64x128xf32, #tpu.memory_space<vmem>>, vector<8x128xf32>
    tpu.vector_store %arg10[%479, %c0_151], %478 {strides = array<i32>} : memref<64x128xf32, #tpu.memory_space<vmem>>, vector<8x128xf32>,
    %c3_i32_152 = arith.constant 3 : i32
    %c8_i32_153 = arith.constant 8 : i32
    %481 = arith.muli %c3_i32_152, %c8_i32_153 : i32
    %482 = tpu.assume_multiple %481, 8 : i32
    %483 = arith.index_cast %482 : i32 to index
    %c0_154 = arith.constant 0 : index
    %484 = vector.load %arg10[%483, %c0_154] : memref<64x128xf32, #tpu.memory_space<vmem>>, vector<8x128xf32>
    %485 = arith.truncf %478 : vector<8x128xf32> to vector<8x128xbf16>
    %cst_155 = arith.constant dense<0.000000e+00> : vector<8x128xf32>
    %486 = tpu.matmul %485, %457, %cst_155 {dimension_numbers = #tpu.dot_dimension_numbers<[1], [0], [0], [1], [0, 0, 1, 1], [], []>} : vector<8x128xbf16>, vector<128x128xbf16>, vector<8x128xf32> -> vector<8x128xf32>
    %487 = arith.addf %484, %486 : vector<8x128xf32>
    %488 = math.tanh %487 : vector<8x128xf32>
    %489 = arith.index_cast %482 : i32 to index
    %c0_156 = arith.constant 0 : index
    %490 = vector.load %arg10[%489, %c0_156] : memref<64x128xf32, #tpu.memory_space<vmem>>, vector<8x128xf32>
    tpu.vector_store %arg10[%489, %c0_156], %488 {strides = array<i32>} : memref<64x128xf32, #tpu.memory_space<vmem>>, vector<8x128xf32>,
    %c4_i32_157 = arith.constant 4 : i32
    %c8_i32_158 = arith.constant 8 : i32
    %491 = arith.muli %c4_i32_157, %c8_i32_158 : i32
    %492 = tpu.assume_multiple %491, 8 : i32
    %493 = arith.index_cast %492 : i32 to index
    %c0_159 = arith.constant 0 : index
    %494 = vector.load %arg10[%493, %c0_159] : memref<64x128xf32, #tpu.memory_space<vmem>>, vector<8x128xf32>
    %495 = arith.truncf %488 : vector<8x128xf32> to vector<8x128xbf16>
    %cst_160 = arith.constant dense<0.000000e+00> : vector<8x128xf32>
    %496 = tpu.matmul %495, %457, %cst_160 {dimension_numbers = #tpu.dot_dimension_numbers<[1], [0], [0], [1], [0, 0, 1, 1], [], []>} : vector<8x128xbf16>, vector<128x128xbf16>, vector<8x128xf32> -> vector<8x128xf32>
    %497 = arith.addf %494, %496 : vector<8x128xf32>
    %498 = math.tanh %497 : vector<8x128xf32>
    %499 = arith.index_cast %492 : i32 to index
    %c0_161 = arith.constant 0 : index
    %500 = vector.load %arg10[%499, %c0_161] : memref<64x128xf32, #tpu.memory_space<vmem>>, vector<8x128xf32>
    tpu.vector_store %arg10[%499, %c0_161], %498 {strides = array<i32>} : memref<64x128xf32, #tpu.memory_space<vmem>>, vector<8x128xf32>,
    %c5_i32_162 = arith.constant 5 : i32
    %c8_i32_163 = arith.constant 8 : i32
    %501 = arith.muli %c5_i32_162, %c8_i32_163 : i32
    %502 = tpu.assume_multiple %501, 8 : i32
    %503 = arith.index_cast %502 : i32 to index
    %c0_164 = arith.constant 0 : index
    %504 = vector.load %arg10[%503, %c0_164] : memref<64x128xf32, #tpu.memory_space<vmem>>, vector<8x128xf32>
    %505 = arith.truncf %498 : vector<8x128xf32> to vector<8x128xbf16>
    %cst_165 = arith.constant dense<0.000000e+00> : vector<8x128xf32>
    %506 = tpu.matmul %505, %457, %cst_165 {dimension_numbers = #tpu.dot_dimension_numbers<[1], [0], [0], [1], [0, 0, 1, 1], [], []>} : vector<8x128xbf16>, vector<128x128xbf16>, vector<8x128xf32> -> vector<8x128xf32>
    %507 = arith.addf %504, %506 : vector<8x128xf32>
    %508 = math.tanh %507 : vector<8x128xf32>
    %509 = arith.index_cast %502 : i32 to index
    %c0_166 = arith.constant 0 : index
    %510 = vector.load %arg10[%509, %c0_166] : memref<64x128xf32, #tpu.memory_space<vmem>>, vector<8x128xf32>
    tpu.vector_store %arg10[%509, %c0_166], %508 {strides = array<i32>} : memref<64x128xf32, #tpu.memory_space<vmem>>, vector<8x128xf32>,
    %c6_i32_167 = arith.constant 6 : i32
    %c8_i32_168 = arith.constant 8 : i32
    %511 = arith.muli %c6_i32_167, %c8_i32_168 : i32
    %512 = tpu.assume_multiple %511, 8 : i32
    %513 = arith.index_cast %512 : i32 to index
    %c0_169 = arith.constant 0 : index
    %514 = vector.load %arg10[%513, %c0_169] : memref<64x128xf32, #tpu.memory_space<vmem>>, vector<8x128xf32>
    %515 = arith.truncf %508 : vector<8x128xf32> to vector<8x128xbf16>
    %cst_170 = arith.constant dense<0.000000e+00> : vector<8x128xf32>
    %516 = tpu.matmul %515, %457, %cst_170 {dimension_numbers = #tpu.dot_dimension_numbers<[1], [0], [0], [1], [0, 0, 1, 1], [], []>} : vector<8x128xbf16>, vector<128x128xbf16>, vector<8x128xf32> -> vector<8x128xf32>
    %517 = arith.addf %514, %516 : vector<8x128xf32>
    %518 = math.tanh %517 : vector<8x128xf32>
    %519 = arith.index_cast %512 : i32 to index
    %c0_171 = arith.constant 0 : index
    %520 = vector.load %arg10[%519, %c0_171] : memref<64x128xf32, #tpu.memory_space<vmem>>, vector<8x128xf32>
    tpu.vector_store %arg10[%519, %c0_171], %518 {strides = array<i32>} : memref<64x128xf32, #tpu.memory_space<vmem>>, vector<8x128xf32>,
    %c7_i32_172 = arith.constant 7 : i32
    %c8_i32_173 = arith.constant 8 : i32
    %521 = arith.muli %c7_i32_172, %c8_i32_173 : i32
    %522 = tpu.assume_multiple %521, 8 : i32
    %523 = arith.index_cast %522 : i32 to index
    %c0_174 = arith.constant 0 : index
    %524 = vector.load %arg10[%523, %c0_174] : memref<64x128xf32, #tpu.memory_space<vmem>>, vector<8x128xf32>
    %525 = arith.truncf %518 : vector<8x128xf32> to vector<8x128xbf16>
    %cst_175 = arith.constant dense<0.000000e+00> : vector<8x128xf32>
    %526 = tpu.matmul %525, %457, %cst_175 {dimension_numbers = #tpu.dot_dimension_numbers<[1], [0], [0], [1], [0, 0, 1, 1], [], []>} : vector<8x128xbf16>, vector<128x128xbf16>, vector<8x128xf32> -> vector<8x128xf32>
    %527 = arith.addf %524, %526 : vector<8x128xf32>
    %528 = math.tanh %527 : vector<8x128xf32>
    %529 = arith.index_cast %522 : i32 to index
    %c0_176 = arith.constant 0 : index
    %530 = vector.load %arg10[%529, %c0_176] : memref<64x128xf32, #tpu.memory_space<vmem>>, vector<8x128xf32>
    tpu.vector_store %arg10[%529, %c0_176], %528 {strides = array<i32>} : memref<64x128xf32, #tpu.memory_space<vmem>>, vector<8x128xf32>,
    %c7_i32_177 = arith.constant 7 : i32
    %c0_178 = arith.constant 0 : index
    %c0_179 = arith.constant 0 : index
    %531 = vector.load %arg10[%c0_178, %c0_179] : memref<64x128xf32, #tpu.memory_space<vmem>>, vector<64x128xf32>
    %532 = arith.truncf %531 : vector<64x128xf32> to vector<64x128xbf16>
    %c0_180 = arith.constant 0 : index
    %c0_181 = arith.constant 0 : index
    %533 = vector.load %arg6[%c0_180, %c0_181] : memref<128x128xbf16, #tpu.memory_space<vmem>>, vector<128x128xbf16>
    %cst_182 = arith.constant dense<0.000000e+00> : vector<64x128xf32>
    %534 = tpu.matmul %532, %533, %cst_182 {dimension_numbers = #tpu.dot_dimension_numbers<[1], [0], [0], [1], [0, 0, 1, 1], [], []>} : vector<64x128xbf16>, vector<128x128xbf16>, vector<64x128xf32> -> vector<64x128xf32>
    %c0_183 = arith.constant 0 : index
    %c0_184 = arith.constant 0 : index
    %535 = vector.load %arg7[%c0_183, %c0_184] : memref<1x128xf32, #tpu.memory_space<vmem>>, vector<1x128xf32>
    %536 = vector.broadcast %535 : vector<1x128xf32> to vector<64x128xf32>
    %537 = arith.addf %534, %536 : vector<64x128xf32>
    %c0_185 = arith.constant 0 : index
    %c0_186 = arith.constant 0 : index
    %538 = vector.load %arg8[%c0_185, %c0_186] : memref<64x128xf32, #tpu.memory_space<vmem>>, vector<64x128xf32>
    tpu.vector_store %arg8[%c0_185, %c0_186], %537 {strides = array<i32>} : memref<64x128xf32, #tpu.memory_space<vmem>>, vector<64x128xf32>,
    return
  }
  func.func @transform_0(%arg0: i32, %arg1: memref<128xi32, #tpu.memory_space<smem>>) -> (i32, i32) {
    %c0_i32 = arith.constant 0 : i32
    %c0_i32_0 = arith.constant 0 : i32
    %c0_i32_1 = arith.constant 0 : i32
    return %c0_i32, %c0_i32_0 : i32, i32
  }
  func.func @transform_1(%arg0: i32, %arg1: memref<128xi32, #tpu.memory_space<smem>>) -> (i32, i32) {
    %c0_i32 = arith.constant 0 : i32
    %c0_i32_0 = arith.constant 0 : i32
    %c0_i32_1 = arith.constant 0 : i32
    return %c0_i32, %c0_i32_0 : i32, i32
  }
  func.func @transform_2(%arg0: i32, %arg1: memref<128xi32, #tpu.memory_space<smem>>) -> (i32, i32) {
    %c0_i32 = arith.constant 0 : i32
    %c0_i32_0 = arith.constant 0 : i32
    %c0_i32_1 = arith.constant 0 : i32
    return %c0_i32, %c0_i32_0 : i32, i32
  }
  func.func @transform_3(%arg0: i32, %arg1: memref<128xi32, #tpu.memory_space<smem>>) -> (i32, i32) {
    %c0_i32 = arith.constant 0 : i32
    %c0_i32_0 = arith.constant 0 : i32
    %c0_i32_1 = arith.constant 0 : i32
    return %c0_i32, %c0_i32_0 : i32, i32
  }
  func.func @transform_4(%arg0: i32, %arg1: memref<128xi32, #tpu.memory_space<smem>>) -> (i32, i32) {
    %c0_i32 = arith.constant 0 : i32
    %c0_i32_0 = arith.constant 0 : i32
    %c0_i32_1 = arith.constant 0 : i32
    return %c0_i32, %c0_i32_0 : i32, i32
  }
  func.func @transform_5(%arg0: i32, %arg1: memref<128xi32, #tpu.memory_space<smem>>) -> (i32, i32) {
    %c0_i32 = arith.constant 0 : i32
    %c0_i32_0 = arith.constant 0 : i32
    %c0_i32_1 = arith.constant 0 : i32
    return %c0_i32, %c0_i32_0 : i32, i32
  }
  func.func @transform_6(%arg0: i32, %arg1: memref<128xi32, #tpu.memory_space<smem>>) -> (i32, i32) {
    %c0_i32 = arith.constant 0 : i32
    %c0_i32_0 = arith.constant 0 : i32
    return %arg0, %c0_i32 : i32, i32
  }
}

</mosaic_0001>

<llo_original>
// kernel: tpu_custom_call.1
$region0: #{tpu_custom_call.1}
  #allocation0 [shape = 'u32[]', space=smem, size = 0x4, offset = 0x4, fixed_abs, tag = 'smem constant byte address 0x4 - core index']
  #allocation1 [shape = 'u32[72,128]{1,0:T(1,128)}', space=vmem, size = 0x9000, scoped, tag = 'internal scratch']
  #allocation2 [shape = 'f32[64,128]{1,0:T(8,128)}', space=vmem, size = 0x8000, scoped, tag = 'scratch operand']
  #allocation3 [shape = 'f32[64,128]{1,0:T(8,128)}', space=vmem, size = 0x8000, scoped, tag = 'scratch operand']
  #allocation4 [shape = 's32[1]{0}', space=sflag, size = 0x4, scoped, tag = 'scoped memory for tpu_custom_call.1']
  #allocation5 [shape = 'u8[512]{0}', space=smem, size = 0x200, scoped, tag = 'prefetched SMEM operand 0']
  %s0 = inlined_call_operand.hbm [shape: s32[128], index: 0, kind: input, shape index: {}]
  %s1 = inlined_call_operand.hbm [shape: f32[32,128], index: 1, kind: input, shape index: {}]
  %s2 = inlined_call_operand.hbm [shape: bf16[128,128], index: 2, kind: input, shape index: {}]
  %s3 = inlined_call_operand.hbm [shape: bf16[128,128], index: 3, kind: input, shape index: {}]
  %s4 = inlined_call_operand.vmem [shape: f32[1,128], index: 4, kind: input, shape index: {}]
  %s5 = inlined_call_operand.hbm [shape: bf16[128,128], index: 5, kind: input, shape index: {}]
  %s6 = inlined_call_operand.vmem [shape: f32[1,128], index: 6, kind: input, shape index: {}]
  %s7 = inlined_call_operand.hbm [shape: f32[128,128], index: 7, kind: output, shape index: {}]
  %s8 = sld [smem:[#allocation0]]
  $region73: #{tpu_custom_call.1} parent=0
    _
  %s10 = ssub.s32 1, %s8
  %s11 = scalar_select 0, %s10, %s8
  %s13 = sshll.u32 %s0, 4
  %s14 = int_to_ptr.hbm [resolvable:$true] %s13
  %16 = dma.hbm_to_smem %s14, 16, [#allocation5], [#allocation4]
  %18 = dma.done [#allocation4], 16
  %19 = sfence
  $region1: #{tpu_custom_call.1} parent=0
    #allocation6 [shape = 'u8[16384]{0}', space=vmem, size = 0x4000, scoped, tag = 'input window, operand 1, single buffered']
    #allocation7 [shape = 's32[2]{0}', space=sflag, size = 0x8, scoped, tag = 'scoped memory for tpu_custom_call.1']
    #allocation8 [shape = 's32[2]{0}', space=sflag, size = 0x8, scoped, tag = 'scoped memory for tpu_custom_call.1']
    #allocation9 [shape = 'u8[32768]{0}', space=vmem, size = 0x8000, scoped, tag = 'input window, operand 2, single buffered']
    #allocation10 [shape = 's32[1]{0}', space=sflag, size = 0x4, scoped, tag = 'scoped memory for tpu_custom_call.1']
    #allocation11 [shape = 'u8[32768]{0}', space=vmem, size = 0x8000, scoped, tag = 'input window, operand 3, single buffered']
    #allocation12 [shape = 'u8[32768]{0}', space=vmem, size = 0x8000, scoped, tag = 'input window, operand 5, single buffered']
    #allocation13 [shape = 's32[1]{0}', space=sflag, size = 0x4, scoped, tag = 'scoped memory for tpu_custom_call.1']
    #allocation14 [shape = 'u8[65536]{0}', space=vmem, size = 0x10000, scoped, tag = 'output window, operand 0']
    %20 = vsyncpa [#allocation7], 0
    %21 = vsyncpa [#allocation10], 0
    %22 = vsyncpa [#allocation13], 0
    %23 = vsyncpa [#allocation8], 0
    %s24 = scalar_lea.sflag [#allocation8], 1
    %25 = vsyncpa %s24, 0
    loop: start=0, step=1, limit=4
    $region2: #{tpu_custom_call.1} parent=1 // loop_pre_header
      _
    $region3: #{tpu_custom_call.1} parent=1 // loop_header
      %s27 = sphi 0, %s31
      %p28 = scmp.ge.s32.totalorder %s27, 4
      %s35 = sphi 0, %s35
      %s37 = sphi 0, %s35
      %s38 = sphi 0, %s37
      %s52 = sphi 0, %s38
      %s56 = sphi 0, %s56
      %s58 = sphi 0, %s56
      %s59 = sphi 0, %s58
      %s73 = sphi 0, %s59
      %s77 = sphi 0, %s77
      %s79 = sphi 0, %s77
      %s80 = sphi 0, %s79
      %s94 = sphi 0, %s80
      %s98 = sphi 0, %s98
      %s100 = sphi 0, %s98
      %s101 = sphi 0, %s100
      %s115 = sphi 0, %s101
      %s119 = sphi 0, %s119
      %s121 = sphi 0, %s119
      %s122 = sphi 0, %s121
      %s136 = sphi 0, %s122
      %s140 = sphi 0, %s140
      %s142 = sphi 0, %s140
      %s143 = sphi 0, %s142
      %s157 = sphi 0, %s143
      %s163 = sphi 0, %s165
      %s166 = sphi 0, %s163
      %s167 = sphi 0, %s166
      %s183 = sphi 0, %s167
    $region4: #{tpu_custom_call.1} parent=1 // loop_header_branch
      %30 = sbr.rel (%p28) target = $region8
    $region5: #{tpu_custom_call.1} parent=1 // loop_body
      %s32 = ssub.s32 %s27, 1
      %s33 = ssub.s32 %s27, 2
      %s34 = sadd.s32 %s27, 1
      %s36 = sadd.s32 %s35, 1
      %p39 = scmp.eq.s32.totalorder %s27, 1
      %p40 = scmp.ne.s32.totalorder %s35, %s37
      %p41 = scmp.eq.s32.totalorder %s27, 0
      %p42 = por %p40, %p41
      %p43 = scmp.ne.s32.totalorder %s35, %s37
      %p44 = scmp.eq.s32.totalorder %s32, 1
      %p45 = por %p43, %p44
      %p46 = scmp.ne.s32.totalorder %s37, %s38
      %p47 = scmp.eq.s32.totalorder %s32, 0
      %p48 = por %p46, %p47
      %p49 = scmp.ne.s32.totalorder %s37, %s38
      %p50 = scmp.eq.s32.totalorder %s33, 1
      %p51 = por %p49, %p50
      %p53 = scmp.ne.s32.totalorder %s38, %s52
      %p54 = scmp.eq.s32.totalorder %s33, 0
      %p55 = por %p53, %p54
      %s57 = sadd.s32 %s56, 1
      %p60 = scmp.eq.s32.totalorder %s27, 1
      %p61 = scmp.ne.s32.totalorder %s56, %s58
      %p62 = scmp.eq.s32.totalorder %s27, 0
      %p63 = por %p61, %p62
      %p64 = scmp.ne.s32.totalorder %s56, %s58
      %p65 = scmp.eq.s32.totalorder %s32, 1
      %p66 = por %p64, %p65
      %p67 = scmp.ne.s32.totalorder %s58, %s59
      %p68 = scmp.eq.s32.totalorder %s32, 0
      %p69 = por %p67, %p68
      %p70 = scmp.ne.s32.totalorder %s58, %s59
      %p71 = scmp.eq.s32.totalorder %s33, 1
      %p72 = por %p70, %p71
      %p74 = scmp.ne.s32.totalorder %s59, %s73
      %p75 = scmp.eq.s32.totalorder %s33, 0
      %p76 = por %p74, %p75
      %s78 = sadd.s32 %s77, 1
      %p81 = scmp.eq.s32.totalorder %s27, 1
      %p82 = scmp.ne.s32.totalorder %s77, %s79
      %p83 = scmp.eq.s32.totalorder %s27, 0
      %p84 = por %p82, %p83
      %p85 = scmp.ne.s32.totalorder %s77, %s79
      %p86 = scmp.eq.s32.totalorder %s32, 1
      %p87 = por %p85, %p86
      %p88 = scmp.ne.s32.totalorder %s79, %s80
      %p89 = scmp.eq.s32.totalorder %s32, 0
      %p90 = por %p88, %p89
      %p91 = scmp.ne.s32.totalorder %s79, %s80
      %p92 = scmp.eq.s32.totalorder %s33, 1
      %p93 = por %p91, %p92
      %p95 = scmp.ne.s32.totalorder %s80, %s94
      %p96 = scmp.eq.s32.totalorder %s33, 0
      %p97 = por %p95, %p96
      %s99 = sadd.s32 %s98, 1
      %p102 = scmp.eq.s32.totalorder %s27, 1
      %p103 = scmp.ne.s32.totalorder %s98, %s100
      %p104 = scmp.eq.s32.totalorder %s27, 0
      %p105 = por %p103, %p104
      %p106 = scmp.ne.s32.totalorder %s98, %s100
      %p107 = scmp.eq.s32.totalorder %s32, 1
      %p108 = por %p106, %p107
      %p109 = scmp.ne.s32.totalorder %s100, %s101
      %p110 = scmp.eq.s32.totalorder %s32, 0
      %p111 = por %p109, %p110
      %p112 = scmp.ne.s32.totalorder %s100, %s101
      %p113 = scmp.eq.s32.totalorder %s33, 1
      %p114 = por %p112, %p113
      %p116 = scmp.ne.s32.totalorder %s101, %s115
      %p117 = scmp.eq.s32.totalorder %s33, 0
      %p118 = por %p116, %p117
      %s120 = sadd.s32 %s119, 1
      %p123 = scmp.eq.s32.totalorder %s27, 1
      %p124 = scmp.ne.s32.totalorder %s119, %s121
      %p125 = scmp.eq.s32.totalorder %s27, 0
      %p126 = por %p124, %p125
      %p127 = scmp.ne.s32.totalorder %s119, %s121
      %p128 = scmp.eq.s32.totalorder %s32, 1
      %p129 = por %p127, %p128
      %p130 = scmp.ne.s32.totalorder %s121, %s122
      %p131 = scmp.eq.s32.totalorder %s32, 0
      %p132 = por %p130, %p131
      %p133 = scmp.ne.s32.totalorder %s121, %s122
      %p134 = scmp.eq.s32.totalorder %s33, 1
      %p135 = por %p133, %p134
      %p137 = scmp.ne.s32.totalorder %s122, %s136
      %p138 = scmp.eq.s32.totalorder %s33, 0
      %p139 = por %p137, %p138
      %s141 = sadd.s32 %s140, 1
      %p144 = scmp.eq.s32.totalorder %s27, 1
      %p145 = scmp.ne.s32.totalorder %s140, %s142
      %p146 = scmp.eq.s32.totalorder %s27, 0
      %p147 = por %p145, %p146
      %p148 = scmp.ne.s32.totalorder %s140, %s142
      %p149 = scmp.eq.s32.totalorder %s32, 1
      %p150 = por %p148, %p149
      %p151 = scmp.ne.s32.totalorder %s142, %s143
      %p152 = scmp.eq.s32.totalorder %s32, 0
      %p153 = por %p151, %p152
      %p154 = scmp.ne.s32.totalorder %s142, %s143
      %p155 = scmp.eq.s32.totalorder %s33, 1
      %p156 = por %p154, %p155
      %p158 = scmp.ne.s32.totalorder %s143, %s157
      %p159 = scmp.eq.s32.totalorder %s33, 0
      %p160 = por %p158, %p159
      %s161 = ssub.s32 %s27, %s34
      %p162 = scmp.eq.s32.totalorder %s161, 0
      %s164 = sadd.s32 %s163, 1
      %s165 = scalar_select %p162, %s163, %s164
      %p168 = pneg %p162
      %p169 = scmp.eq.s32.totalorder %s27, 1
      %p170 = por %p168, %p169
      %p171 = scmp.ne.s32.totalorder %s163, %s166
      %p172 = scmp.eq.s32.totalorder %s27, 0
      %p173 = por %p171, %p172
      %p174 = scmp.ne.s32.totalorder %s163, %s166
      %p175 = scmp.eq.s32.totalorder %s32, 1
      %p176 = por %p174, %p175
      %p177 = scmp.ne.s32.totalorder %s166, %s167
      %p178 = scmp.eq.s32.totalorder %s32, 0
      %p179 = por %p177, %p178
      %p180 = scmp.ne.s32.totalorder %s166, %s167
      %p181 = scmp.eq.s32.totalorder %s33, 1
      %p182 = por %p180, %p181
      %p184 = scmp.ne.s32.totalorder %s167, %s183
      %p185 = scmp.eq.s32.totalorder %s33, 0
      %p186 = por %p184, %p185
      %p187 = scmp.le.s32.totalorder 1, %s27
      %p188 = scmp.lt.s32.totalorder %s27, 3
      %p189 = pnand %p187, %p188
      %p190 = pneg %p189
      // Predicated region
      $region9: #{tpu_custom_call.1} parent=5 // pred_check
        _
      $region10: #{tpu_custom_call.1} parent=5 // pred_check_branch
        %192 = sbr.rel (%p189) target = $region12
      $region11: #{tpu_custom_call.1} parent=5 // pred_region
        %s193 = ssub.s32 %s27, 1
        // Predicated region
        $region13: #{tpu_custom_call.1} parent=11 // pred_check
          %p194 = pneg %p48
        $region14: #{tpu_custom_call.1} parent=11 // pred_check_branch
          %196 = sbr.rel (%p194) target = $region16
        $region15: #{tpu_custom_call.1} parent=11 // pred_region
          %198 = vsyncadd [#allocation7], 0
          %s199 = sshll.u32 %s1, 4
          %s200 = int_to_ptr.hbm [resolvable:$true] %s199
          %s201 = sshll.u32 [#allocation6], 4
          %s202 = int_to_ptr.vmem [resolvable:$true] %s201
          %207 = dma.hbm_to_vmem [thread:$0]  %s200, 512, %s202, [#allocation7], 128, 128, 8
        $region16: #{tpu_custom_call.1} parent=11 // pred_fallthru
          _
        // Predicated region
        $region17: #{tpu_custom_call.1} parent=11 // pred_check
          %p208 = pneg %p69
        $region18: #{tpu_custom_call.1} parent=11 // pred_check_branch
          %210 = sbr.rel (%p208) target = $region20
        $region19: #{tpu_custom_call.1} parent=11 // pred_region
          %212 = vsyncadd [#allocation10], 0
          %s213 = sshll.u32 %s2, 4
          %s214 = int_to_ptr.hbm [resolvable:$true] %s213
          %s215 = sshll.u32 [#allocation9], 4
          %s216 = int_to_ptr.vmem [resolvable:$true] %s215
          %221 = dma.hbm_to_vmem [thread:$0]  %s214, 1024, %s216, [#allocation10], 64, 64, 4
        $region20: #{tpu_custom_call.1} parent=11 // pred_fallthru
          _
        // Predicated region
        $region21: #{tpu_custom_call.1} parent=11 // pred_check
          %p222 = pneg %p90
        $region22: #{tpu_custom_call.1} parent=11 // pred_check_branch
          %224 = sbr.rel (%p222) target = $region24
        $region23: #{tpu_custom_call.1} parent=11 // pred_region
          %226 = vsyncadd [#allocation10], 0
          %s227 = sshll.u32 %s3, 4
          %s228 = int_to_ptr.hbm [resolvable:$true] %s227
          %s229 = sshll.u32 [#allocation11], 4
          %s230 = int_to_ptr.vmem [resolvable:$true] %s229
          %235 = dma.hbm_to_vmem [thread:$0]  %s228, 1024, %s230, [#allocation10], 64, 64, 4
        $region24: #{tpu_custom_call.1} parent=11 // pred_fallthru
          _
        // Predicated region
        $region25: #{tpu_custom_call.1} parent=11 // pred_check
          %p236 = pneg %p111
        $region26: #{tpu_custom_call.1} parent=11 // pred_check_branch
          %238 = sbr.rel (%p236) target = $region28
        $region27: #{tpu_custom_call.1} parent=11 // pred_region
          _
        $region28: #{tpu_custom_call.1} parent=11 // pred_fallthru
          _
        // Predicated region
        $region29: #{tpu_custom_call.1} parent=11 // pred_check
          %p239 = pneg %p132
        $region30: #{tpu_custom_call.1} parent=11 // pred_check_branch
          %241 = sbr.rel (%p239) target = $region32
        $region31: #{tpu_custom_call.1} parent=11 // pred_region
          %243 = vsyncadd [#allocation13], 0
          %s244 = sshll.u32 %s5, 4
          %s245 = int_to_ptr.hbm [resolvable:$true] %s244
          %s246 = sshll.u32 [#allocation12], 4
          %s247 = int_to_ptr.vmem [resolvable:$true] %s246
          %252 = dma.hbm_to_vmem [thread:$0]  %s245, 1024, %s247, [#allocation13], 64, 64, 4
        $region32: #{tpu_custom_call.1} parent=11 // pred_fallthru
          _
        // Predicated region
        $region33: #{tpu_custom_call.1} parent=11 // pred_check
          %p253 = pneg %p153
        $region34: #{tpu_custom_call.1} parent=11 // pred_check_branch
          %255 = sbr.rel (%p253) target = $region36
        $region35: #{tpu_custom_call.1} parent=11 // pred_region
          _
        $region36: #{tpu_custom_call.1} parent=11 // pred_fallthru
          _
      $region12: #{tpu_custom_call.1} parent=5 // pred_fallthru
        _
      %p256 = scmp.lt.s32.totalorder %s27, 2
      // Predicated region
      $region37: #{tpu_custom_call.1} parent=5 // pred_check
        %p257 = pneg %p256
      $region38: #{tpu_custom_call.1} parent=5 // pred_check_branch
        %259 = sbr.rel (%p257) target = $region40
      $region39: #{tpu_custom_call.1} parent=5 // pred_region
        _
      $region40: #{tpu_custom_call.1} parent=5 // pred_fallthru
        _
      %p260 = scmp.le.s32.totalorder 1, %s27
      %p261 = scmp.lt.s32.totalorder %s27, 3
      %p262 = pnand %p260, %p261
      %p263 = pneg %p262
      // Predicated region
      $region41: #{tpu_custom_call.1} parent=5 // pred_check
        _
      $region42: #{tpu_custom_call.1} parent=5 // pred_check_branch
        %265 = sbr.rel (%p262) target = $region44
      $region43: #{tpu_custom_call.1} parent=5 // pred_region
        %s266 = ssub.s32 %s27, 1
        // Predicated region
        $region45: #{tpu_custom_call.1} parent=43 // pred_check
          %p267 = pneg %p48
        $region46: #{tpu_custom_call.1} parent=43 // pred_check_branch
          %269 = sbr.rel (%p267) target = $region48
        $region47: #{tpu_custom_call.1} parent=43 // pred_region
          %271 = dma.done [#allocation7], 512
        $region48: #{tpu_custom_call.1} parent=43 // pred_fallthru
          _
        // Predicated region
        $region49: #{tpu_custom_call.1} parent=43 // pred_check
          %p272 = pneg %p69
        $region50: #{tpu_custom_call.1} parent=43 // pred_check_branch
          %274 = sbr.rel (%p272) target = $region52
        $region51: #{tpu_custom_call.1} parent=43 // pred_region
          %276 = dma.done [#allocation10], 1024
        $region52: #{tpu_custom_call.1} parent=43 // pred_fallthru
          _
        // Predicated region
        $region53: #{tpu_custom_call.1} parent=43 // pred_check
          %p277 = pneg %p90
        $region54: #{tpu_custom_call.1} parent=43 // pred_check_branch
          %279 = sbr.rel (%p277) target = $region56
        $region55: #{tpu_custom_call.1} parent=43 // pred_region
          %281 = dma.done [#allocation10], 1024
        $region56: #{tpu_custom_call.1} parent=43 // pred_fallthru
          _
        // Predicated region
        $region57: #{tpu_custom_call.1} parent=43 // pred_check
          %p282 = pneg %p132
        $region58: #{tpu_custom_call.1} parent=43 // pred_check_branch
          %284 = sbr.rel (%p282) target = $region60
        $region59: #{tpu_custom_call.1} parent=43 // pred_region
          %286 = dma.done [#allocation13], 1024
        $region60: #{tpu_custom_call.1} parent=43 // pred_fallthru
          _
        %p287 = pneg %p48
        %p288 = pneg %p45
        %p289 = pneg %p69
        %p290 = pneg %p66
        %p291 = pneg %p90
        %p292 = pneg %p87
        %p293 = pneg %p111
        %p294 = pneg %p108
        %p295 = pneg %p132
        %p296 = pneg %p129
        %p297 = pneg %p153
        %p298 = pneg %p150
        %p299 = pneg %p179
        %p300 = pneg %p176
        %s301 = sand.u32 %s166, 1
        %s302 = scalar_lea.sflag [#allocation8], %s301
        %s303 = sand.u32 %s166, 1
        %s304 = smul.addr %s303, 64
        %s305 = scalar_lea.vmem [#allocation14], %s304
        %s306 = smul.u32 8, %s32
        %s307 = smul.u32 %s32, 64
        %s308 = sld [smem:[#allocation5 + %s307]]
        %s309 = scalar_lea.vmem [#allocation6], %s308
        %v310 = vld [vmem:[%s309] sm:$0x1]
        %311 = vst [vmem:[#allocation2] sm:$0x1] %v310
        %s312 = sadd.s32 %s307, 1
        %s313 = sld [smem:[#allocation5 + %s312]]
        %s314 = scalar_lea.vmem [#allocation6], %s313
        %v315 = vld [vmem:[%s314] sm:$0x1]
        %316 = vst [vmem:[#allocation2 + $0x1] sm:$0x1] %v315
        %s317 = sadd.s32 %s307, 2
        %s318 = sld [smem:[#allocation5 + %s317]]
        %s319 = scalar_lea.vmem [#allocation6], %s318
        %v320 = vld [vmem:[%s319] sm:$0x1]
        %321 = vst [vmem:[#allocation2 + $0x2] sm:$0x1] %v320
        %s322 = sadd.s32 %s307, 3
        %s323 = sld [smem:[#allocation5 + %s322]]
        %s324 = scalar_lea.vmem [#allocation6], %s323
        %v325 = vld [vmem:[%s324] sm:$0x1]
        %326 = vst [vmem:[#allocation2 + $0x3] sm:$0x1] %v325
        %s327 = sadd.s32 %s307, 4
        %s328 = sld [smem:[#allocation5 + %s327]]
        %s329 = scalar_lea.vmem [#allocation6], %s328
        %v330 = vld [vmem:[%s329] sm:$0x1]
        %331 = vst [vmem:[#allocation2 + $0x4] sm:$0x1] %v330
        %s332 = sadd.s32 %s307, 5
        %s333 = sld [smem:[#allocation5 + %s332]]
        %s334 = scalar_lea.vmem [#allocation6], %s333
        %v335 = vld [vmem:[%s334] sm:$0x1]
        %336 = vst [vmem:[#allocation2 + $0x5] sm:$0x1] %v335
        %s337 = sadd.s32 %s307, 6
        %s338 = sld [smem:[#allocation5 + %s337]]
        %s339 = scalar_lea.vmem [#allocation6], %s338
        %v340 = vld [vmem:[%s339] sm:$0x1]
        %341 = vst [vmem:[#allocation2 + $0x6] sm:$0x1] %v340
        %s342 = sadd.s32 %s307, 7
        %s343 = sld [smem:[#allocation5 + %s342]]
        %s344 = scalar_lea.vmem [#allocation6], %s343
        %v345 = vld [vmem:[%s344] sm:$0x1]
        %346 = vst [vmem:[#allocation2 + $0x7] sm:$0x1] %v345
        %s347 = sadd.s32 %s307, 8
        %s348 = sld [smem:[#allocation5 + %s347]]
        %s349 = scalar_lea.vmem [#allocation6], %s348
        %v350 = vld [vmem:[%s349] sm:$0x1]
        %351 = vst [vmem:[#allocation2 + $0x8] sm:$0x1] %v350
        %s352 = sadd.s32 %s307, 9
        %s353 = sld [smem:[#allocation5 + %s352]]
        %s354 = scalar_lea.vmem [#allocation6], %s353
        %v355 = vld [vmem:[%s354] sm:$0x1]
        %356 = vst [vmem:[#allocation2 + $0x9] sm:$0x1] %v355
        %s357 = sadd.s32 %s307, 10
        %s358 = sld [smem:[#allocation5 + %s357]]
        %s359 = scalar_lea.vmem [#allocation6], %s358
        %v360 = vld [vmem:[%s359] sm:$0x1]
        %361 = vst [vmem:[#allocation2 + $0xa] sm:$0x1] %v360
        %s362 = sadd.s32 %s307, 11
        %s363 = sld [smem:[#allocation5 + %s362]]
        %s364 = scalar_lea.vmem [#allocation6], %s363
        %v365 = vld [vmem:[%s364] sm:$0x1]
        %366 = vst [vmem:[#allocation2 + $0xb] sm:$0x1] %v365
        %s367 = sadd.s32 %s307, 12
        %s368 = sld [smem:[#allocation5 + %s367]]
        %s369 = scalar_lea.vmem [#allocation6], %s368
        %v370 = vld [vmem:[%s369] sm:$0x1]
        %371 = vst [vmem:[#allocation2 + $0xc] sm:$0x1] %v370
        %s372 = sadd.s32 %s307, 13
        %s373 = sld [smem:[#allocation5 + %s372]]
        %s374 = scalar_lea.vmem [#allocation6], %s373
        %v375 = vld [vmem:[%s374] sm:$0x1]
        %376 = vst [vmem:[#allocation2 + $0xd] sm:$0x1] %v375
        %s377 = sadd.s32 %s307, 14
        %s378 = sld [smem:[#allocation5 + %s377]]
        %s379 = scalar_lea.vmem [#allocation6], %s378
        %v380 = vld [vmem:[%s379] sm:$0x1]
        %381 = vst [vmem:[#allocation2 + $0xe] sm:$0x1] %v380
        %s382 = sadd.s32 %s307, 15
        %s383 = sld [smem:[#allocation5 + %s382]]
        %s384 = scalar_lea.vmem [#allocation6], %s383
        %v385 = vld [vmem:[%s384] sm:$0x1]
        %386 = vst [vmem:[#allocation2 + $0xf] sm:$0x1] %v385
        %s387 = sadd.s32 %s307, 16
        %s388 = sld [smem:[#allocation5 + %s387]]
        %s389 = scalar_lea.vmem [#allocation6], %s388
        %v390 = vld [vmem:[%s389] sm:$0x1]
        %391 = vst [vmem:[#allocation2 + $0x10] sm:$0x1] %v390
        %s392 = sadd.s32 %s307, 17
        %s393 = sld [smem:[#allocation5 + %s392]]
        %s394 = scalar_lea.vmem [#allocation6], %s393
        %v395 = vld [vmem:[%s394] sm:$0x1]
        %396 = vst [vmem:[#allocation2 + $0x11] sm:$0x1] %v395
        %s397 = sadd.s32 %s307, 18
        %s398 = sld [smem:[#allocation5 + %s397]]
        %s399 = scalar_lea.vmem [#allocation6], %s398
        %v400 = vld [vmem:[%s399] sm:$0x1]
        %401 = vst [vmem:[#allocation2 + $0x12] sm:$0x1] %v400
        %s402 = sadd.s32 %s307, 19
        %s403 = sld [smem:[#allocation5 + %s402]]
        %s404 = scalar_lea.vmem [#allocation6], %s403
        %v405 = vld [vmem:[%s404] sm:$0x1]
        %406 = vst [vmem:[#allocation2 + $0x13] sm:$0x1] %v405
        %s407 = sadd.s32 %s307, 20
        %s408 = sld [smem:[#allocation5 + %s407]]
        %s409 = scalar_lea.vmem [#allocation6], %s408
        %v410 = vld [vmem:[%s409] sm:$0x1]
        %411 = vst [vmem:[#allocation2 + $0x14] sm:$0x1] %v410
        %s412 = sadd.s32 %s307, 21
        %s413 = sld [smem:[#allocation5 + %s412]]
        %s414 = scalar_lea.vmem [#allocation6], %s413
        %v415 = vld [vmem:[%s414] sm:$0x1]
        %416 = vst [vmem:[#allocation2 + $0x15] sm:$0x1] %v415
        %s417 = sadd.s32 %s307, 22
        %s418 = sld [smem:[#allocation5 + %s417]]
        %s419 = scalar_lea.vmem [#allocation6], %s418
        %v420 = vld [vmem:[%s419] sm:$0x1]
        %421 = vst [vmem:[#allocation2 + $0x16] sm:$0x1] %v420
        %s422 = sadd.s32 %s307, 23
        %s423 = sld [smem:[#allocation5 + %s422]]
        %s424 = scalar_lea.vmem [#allocation6], %s423
        %v425 = vld [vmem:[%s424] sm:$0x1]
        %426 = vst [vmem:[#allocation2 + $0x17] sm:$0x1] %v425
        %s427 = sadd.s32 %s307, 24
        %s428 = sld [smem:[#allocation5 + %s427]]
        %s429 = scalar_lea.vmem [#allocation6], %s428
        %v430 = vld [vmem:[%s429] sm:$0x1]
        %431 = vst [vmem:[#allocation2 + $0x18] sm:$0x1] %v430
        %s432 = sadd.s32 %s307, 25
        %s433 = sld [smem:[#allocation5 + %s432]]
        %s434 = scalar_lea.vmem [#allocation6], %s433
        %v435 = vld [vmem:[%s434] sm:$0x1]
        %436 = vst [vmem:[#allocation2 + $0x19] sm:$0x1] %v435
        %s437 = sadd.s32 %s307, 26
        %s438 = sld [smem:[#allocation5 + %s437]]
        %s439 = scalar_lea.vmem [#allocation6], %s438
        %v440 = vld [vmem:[%s439] sm:$0x1]
        %441 = vst [vmem:[#allocation2 + $0x1a] sm:$0x1] %v440
        %s442 = sadd.s32 %s307, 27
        %s443 = sld [smem:[#allocation5 + %s442]]
        %s444 = scalar_lea.vmem [#allocation6], %s443
        %v445 = vld [vmem:[%s444] sm:$0x1]
        %446 = vst [vmem:[#allocation2 + $0x1b] sm:$0x1] %v445
        %s447 = sadd.s32 %s307, 28
        %s448 = sld [smem:[#allocation5 + %s447]]
        %s449 = scalar_lea.vmem [#allocation6], %s448
        %v450 = vld [vmem:[%s449] sm:$0x1]
        %451 = vst [vmem:[#allocation2 + $0x1c] sm:$0x1] %v450
        %s452 = sadd.s32 %s307, 29
        %s453 = sld [smem:[#allocation5 + %s452]]
        %s454 = scalar_lea.vmem [#allocation6], %s453
        %v455 = vld [vmem:[%s454] sm:$0x1]
        %456 = vst [vmem:[#allocation2 + $0x1d] sm:$0x1] %v455
        %s457 = sadd.s32 %s307, 30
        %s458 = sld [smem:[#allocation5 + %s457]]
        %s459 = scalar_lea.vmem [#allocation6], %s458
        %v460 = vld [vmem:[%s459] sm:$0x1]
        %461 = vst [vmem:[#allocation2 + $0x1e] sm:$0x1] %v460
        %s462 = sadd.s32 %s307, 31
        %s463 = sld [smem:[#allocation5 + %s462]]
        %s464 = scalar_lea.vmem [#allocation6], %s463
        %v465 = vld [vmem:[%s464] sm:$0x1]
        %466 = vst [vmem:[#allocation2 + $0x1f] sm:$0x1] %v465
        %s467 = sadd.s32 %s307, 32
        %s468 = sld [smem:[#allocation5 + %s467]]
        %s469 = scalar_lea.vmem [#allocation6], %s468
        %v470 = vld [vmem:[%s469] sm:$0x1]
        %471 = vst [vmem:[#allocation2 + $0x20] sm:$0x1] %v470
        %s472 = sadd.s32 %s307, 33
        %s473 = sld [smem:[#allocation5 + %s472]]
        %s474 = scalar_lea.vmem [#allocation6], %s473
        %v475 = vld [vmem:[%s474] sm:$0x1]
        %476 = vst [vmem:[#allocation2 + $0x21] sm:$0x1] %v475
        %s477 = sadd.s32 %s307, 34
        %s478 = sld [smem:[#allocation5 + %s477]]
        %s479 = scalar_lea.vmem [#allocation6], %s478
        %v480 = vld [vmem:[%s479] sm:$0x1]
        %481 = vst [vmem:[#allocation2 + $0x22] sm:$0x1] %v480
        %s482 = sadd.s32 %s307, 35
        %s483 = sld [smem:[#allocation5 + %s482]]
        %s484 = scalar_lea.vmem [#allocation6], %s483
        %v485 = vld [vmem:[%s484] sm:$0x1]
        %486 = vst [vmem:[#allocation2 + $0x23] sm:$0x1] %v485
        %s487 = sadd.s32 %s307, 36
        %s488 = sld [smem:[#allocation5 + %s487]]
        %s489 = scalar_lea.vmem [#allocation6], %s488
        %v490 = vld [vmem:[%s489] sm:$0x1]
        %491 = vst [vmem:[#allocation2 + $0x24] sm:$0x1] %v490
        %s492 = sadd.s32 %s307, 37
        %s493 = sld [smem:[#allocation5 + %s492]]
        %s494 = scalar_lea.vmem [#allocation6], %s493
        %v495 = vld [vmem:[%s494] sm:$0x1]
        %496 = vst [vmem:[#allocation2 + $0x25] sm:$0x1] %v495
        %s497 = sadd.s32 %s307, 38
        %s498 = sld [smem:[#allocation5 + %s497]]
        %s499 = scalar_lea.vmem [#allocation6], %s498
        %v500 = vld [vmem:[%s499] sm:$0x1]
        %501 = vst [vmem:[#allocation2 + $0x26] sm:$0x1] %v500
        %s502 = sadd.s32 %s307, 39
        %s503 = sld [smem:[#allocation5 + %s502]]
        %s504 = scalar_lea.vmem [#allocation6], %s503
        %v505 = vld [vmem:[%s504] sm:$0x1]
        %506 = vst [vmem:[#allocation2 + $0x27] sm:$0x1] %v505
        %s507 = sadd.s32 %s307, 40
        %s508 = sld [smem:[#allocation5 + %s507]]
        %s509 = scalar_lea.vmem [#allocation6], %s508
        %v510 = vld [vmem:[%s509] sm:$0x1]
        %511 = vst [vmem:[#allocation2 + $0x28] sm:$0x1] %v510
        %s512 = sadd.s32 %s307, 41
        %s513 = sld [smem:[#allocation5 + %s512]]
        %s514 = scalar_lea.vmem [#allocation6], %s513
        %v515 = vld [vmem:[%s514] sm:$0x1]
        %516 = vst [vmem:[#allocation2 + $0x29] sm:$0x1] %v515
        %s517 = sadd.s32 %s307, 42
        %s518 = sld [smem:[#allocation5 + %s517]]
        %s519 = scalar_lea.vmem [#allocation6], %s518
        %v520 = vld [vmem:[%s519] sm:$0x1]
        %521 = vst [vmem:[#allocation2 + $0x2a] sm:$0x1] %v520
        %s522 = sadd.s32 %s307, 43
        %s523 = sld [smem:[#allocation5 + %s522]]
        %s524 = scalar_lea.vmem [#allocation6], %s523
        %v525 = vld [vmem:[%s524] sm:$0x1]
        %526 = vst [vmem:[#allocation2 + $0x2b] sm:$0x1] %v525
        %s527 = sadd.s32 %s307, 44
        %s528 = sld [smem:[#allocation5 + %s527]]
        %s529 = scalar_lea.vmem [#allocation6], %s528
        %v530 = vld [vmem:[%s529] sm:$0x1]
        %531 = vst [vmem:[#allocation2 + $0x2c] sm:$0x1] %v530
        %s532 = sadd.s32 %s307, 45
        %s533 = sld [smem:[#allocation5 + %s532]]
        %s534 = scalar_lea.vmem [#allocation6], %s533
        %v535 = vld [vmem:[%s534] sm:$0x1]
        %536 = vst [vmem:[#allocation2 + $0x2d] sm:$0x1] %v535
        %s537 = sadd.s32 %s307, 46
        %s538 = sld [smem:[#allocation5 + %s537]]
        %s539 = scalar_lea.vmem [#allocation6], %s538
        %v540 = vld [vmem:[%s539] sm:$0x1]
        %541 = vst [vmem:[#allocation2 + $0x2e] sm:$0x1] %v540
        %s542 = sadd.s32 %s307, 47
        %s543 = sld [smem:[#allocation5 + %s542]]
        %s544 = scalar_lea.vmem [#allocation6], %s543
        %v545 = vld [vmem:[%s544] sm:$0x1]
        %546 = vst [vmem:[#allocation2 + $0x2f] sm:$0x1] %v545
        %s547 = sadd.s32 %s307, 48
        %s548 = sld [smem:[#allocation5 + %s547]]
        %s549 = scalar_lea.vmem [#allocation6], %s548
        %v550 = vld [vmem:[%s549] sm:$0x1]
        %551 = vst [vmem:[#allocation2 + $0x30] sm:$0x1] %v550
        %s552 = sadd.s32 %s307, 49
        %s553 = sld [smem:[#allocation5 + %s552]]
        %s554 = scalar_lea.vmem [#allocation6], %s553
        %v555 = vld [vmem:[%s554] sm:$0x1]
        %556 = vst [vmem:[#allocation2 + $0x31] sm:$0x1] %v555
        %s557 = sadd.s32 %s307, 50
        %s558 = sld [smem:[#allocation5 + %s557]]
        %s559 = scalar_lea.vmem [#allocation6], %s558
        %v560 = vld [vmem:[%s559] sm:$0x1]
        %561 = vst [vmem:[#allocation2 + $0x32] sm:$0x1] %v560
        %s562 = sadd.s32 %s307, 51
        %s563 = sld [smem:[#allocation5 + %s562]]
        %s564 = scalar_lea.vmem [#allocation6], %s563
        %v565 = vld [vmem:[%s564] sm:$0x1]
        %566 = vst [vmem:[#allocation2 + $0x33] sm:$0x1] %v565
        %s567 = sadd.s32 %s307, 52
        %s568 = sld [smem:[#allocation5 + %s567]]
        %s569 = scalar_lea.vmem [#allocation6], %s568
        %v570 = vld [vmem:[%s569] sm:$0x1]
        %571 = vst [vmem:[#allocation2 + $0x34] sm:$0x1] %v570
        %s572 = sadd.s32 %s307, 53
        %s573 = sld [smem:[#allocation5 + %s572]]
        %s574 = scalar_lea.vmem [#allocation6], %s573
        %v575 = vld [vmem:[%s574] sm:$0x1]
        %576 = vst [vmem:[#allocation2 + $0x35] sm:$0x1] %v575
        %s577 = sadd.s32 %s307, 54
        %s578 = sld [smem:[#allocation5 + %s577]]
        %s579 = scalar_lea.vmem [#allocation6], %s578
        %v580 = vld [vmem:[%s579] sm:$0x1]
        %581 = vst [vmem:[#allocation2 + $0x36] sm:$0x1] %v580
        %s582 = sadd.s32 %s307, 55
        %s583 = sld [smem:[#allocation5 + %s582]]
        %s584 = scalar_lea.vmem [#allocation6], %s583
        %v585 = vld [vmem:[%s584] sm:$0x1]
        %586 = vst [vmem:[#allocation2 + $0x37] sm:$0x1] %v585
        %s587 = sadd.s32 %s307, 56
        %s588 = sld [smem:[#allocation5 + %s587]]
        %s589 = scalar_lea.vmem [#allocation6], %s588
        %v590 = vld [vmem:[%s589] sm:$0x1]
        %591 = vst [vmem:[#allocation2 + $0x38] sm:$0x1] %v590
        %s592 = sadd.s32 %s307, 57
        %s593 = sld [smem:[#allocation5 + %s592]]
        %s594 = scalar_lea.vmem [#allocation6], %s593
        %v595 = vld [vmem:[%s594] sm:$0x1]
        %596 = vst [vmem:[#allocation2 + $0x39] sm:$0x1] %v595
        %s597 = sadd.s32 %s307, 58
        %s598 = sld [smem:[#allocation5 + %s597]]
        %s599 = scalar_lea.vmem [#allocation6], %s598
        %v600 = vld [vmem:[%s599] sm:$0x1]
        %601 = vst [vmem:[#allocation2 + $0x3a] sm:$0x1] %v600
        %s602 = sadd.s32 %s307, 59
        %s603 = sld [smem:[#allocation5 + %s602]]
        %s604 = scalar_lea.vmem [#allocation6], %s603
        %v605 = vld [vmem:[%s604] sm:$0x1]
        %606 = vst [vmem:[#allocation2 + $0x3b] sm:$0x1] %v605
        %s607 = sadd.s32 %s307, 60
        %s608 = sld [smem:[#allocation5 + %s607]]
        %s609 = scalar_lea.vmem [#allocation6], %s608
        %v610 = vld [vmem:[%s609] sm:$0x1]
        %611 = vst [vmem:[#allocation2 + $0x3c] sm:$0x1] %v610
        %s612 = sadd.s32 %s307, 61
        %s613 = sld [smem:[#allocation5 + %s612]]
        %s614 = scalar_lea.vmem [#allocation6], %s613
        %v615 = vld [vmem:[%s614] sm:$0x1]
        %616 = vst [vmem:[#allocation2 + $0x3d] sm:$0x1] %v615
        %s617 = sadd.s32 %s307, 62
        %s618 = sld [smem:[#allocation5 + %s617]]
        %s619 = scalar_lea.vmem [#allocation6], %s618
        %v620 = vld [vmem:[%s619] sm:$0x1]
        %621 = vst [vmem:[#allocation2 + $0x3e] sm:$0x1] %v620
        %s622 = sadd.s32 %s307, 63
        %s623 = sld [smem:[#allocation5 + %s622]]
        %s624 = scalar_lea.vmem [#allocation6], %s623
        %v625 = vld [vmem:[%s624] sm:$0x1]
        %626 = vst [vmem:[#allocation2 + $0x3f] sm:$0x1] %v625
        %v627 = vld [vmem:[#allocation2] sm:$0xff]
        %v628 = vld [vmem:[#allocation2 + $0x8] sm:$0xff]
        %v629 = vld [vmem:[#allocation2 + $0x10] sm:$0xff]
        %v630 = vld [vmem:[#allocation2 + $0x18] sm:$0xff]
        %v631 = vld [vmem:[#allocation2 + $0x20] sm:$0xff]
        %v632 = vld [vmem:[#allocation2 + $0x28] sm:$0xff]
        %v633 = vld [vmem:[#allocation2 + $0x30] sm:$0xff]
        %v634 = vld [vmem:[#allocation2 + $0x38] sm:$0xff]
        %v635 = vpack.c.bf16 %v628, %v627
        %v636 = vpack.c.bf16 %v630, %v629
        %v637 = vpack.c.bf16 %v632, %v631
        %v638 = vpack.c.bf16 %v634, %v633
        %v639 = vld [vmem:[#allocation9] sm:$0xf]
        %v640 = vld [vmem:[#allocation9 + $0x4] sm:$0xf]
        %v641 = vld [vmem:[#allocation9 + $0x8] sm:$0xf]
        %v642 = vld [vmem:[#allocation9 + $0xc] sm:$0xf]
        %v643 = vld [vmem:[#allocation9 + $0x10] sm:$0xf]
        %v644 = vld [vmem:[#allocation9 + $0x14] sm:$0xf]
        %v645 = vld [vmem:[#allocation9 + $0x18] sm:$0xf]
        %v646 = vld [vmem:[#allocation9 + $0x1c] sm:$0xf]
        %v647 = vld [vmem:[#allocation9 + $0x20] sm:$0xf]
        %v648 = vld [vmem:[#allocation9 + $0x24] sm:$0xf]
        %v649 = vld [vmem:[#allocation9 + $0x28] sm:$0xf]
        %v650 = vld [vmem:[#allocation9 + $0x2c] sm:$0xf]
        %v651 = vld [vmem:[#allocation9 + $0x30] sm:$0xf]
        %v652 = vld [vmem:[#allocation9 + $0x34] sm:$0xf]
        %v653 = vld [vmem:[#allocation9 + $0x38] sm:$0xf]
        %v654 = vld [vmem:[#allocation9 + $0x3c] sm:$0xf]
        %v655 = vld [vmem:[%s4] sm:$0x1]
        %v657 = vperm.slane %v655, 0
        %v675 = vunpack.c.l.b16 %v639
        %v676 = vunpack.c.l.b16 %v640
        %v677 = vunpack.c.l.b16 %v641
        %v678 = vunpack.c.l.b16 %v642
        %v679 = vunpack.c.l.b16 %v643
        %v680 = vunpack.c.l.b16 %v644
        %v681 = vunpack.c.l.b16 %v645
        %v682 = vunpack.c.l.b16 %v646
        %v683 = vunpack.c.l.b16 %v647
        %v684 = vunpack.c.l.b16 %v648
        %v685 = vunpack.c.l.b16 %v649
        %v686 = vunpack.c.l.b16 %v650
        %v687 = vunpack.c.l.b16 %v651
        %v688 = vunpack.c.l.b16 %v652
        %v689 = vunpack.c.l.b16 %v653
        %v690 = vunpack.c.l.b16 %v654
        %v691 = vpack.c.b16 %v676, %v675
        %v692 = vpack.c.b16 %v678, %v677
        %v693 = vpack.c.b16 %v680, %v679
        %v694 = vpack.c.b16 %v682, %v681
        %v695 = vpack.c.b16 %v684, %v683
        %v696 = vpack.c.b16 %v686, %v685
        %v697 = vpack.c.b16 %v688, %v687
        %v698 = vpack.c.b16 %v690, %v689
        %707 = vmatpush.bf16.msra.mxu0 %v698
        %708 = vmatpush.bf16.msra.mxu0 %v697
        %709 = vmatpush.bf16.msra.mxu0 %v696
        %710 = vmatpush.bf16.msra.mxu0 %v695
        %711 = vmatpush.bf16.msra.mxu0 %v694
        %712 = vmatpush.bf16.msra.mxu0 %v693
        %713 = vmatpush.bf16.msra.mxu0 %v692
        %714 = vmatpush.bf16.msra.mxu0 %v691
        %715 = vmatmul.bf16.gmra.mxu0 %v635
        %v716 = vpop.f32.mrf.mxu0
        %v717 = vadd.f32 %v657, %v716
        %v718 = vpop.f32.mrf.mxu0
        %v719 = vadd.f32 %v657, %v718
        %720 = vmatmul.bf16.gmra.mxu0 %v636
        %v721 = vpop.f32.mrf.mxu0
        %v722 = vadd.f32 %v657, %v721
        %v723 = vpop.f32.mrf.mxu0
        %v724 = vadd.f32 %v657, %v723
        %725 = vmatmul.bf16.gmra.mxu0 %v637
        %v726 = vpop.f32.mrf.mxu0
        %v727 = vadd.f32 %v657, %v726
        %v728 = vpop.f32.mrf.mxu0
        %v729 = vadd.f32 %v657, %v728
        %730 = vmatmul.bf16.gmra.mxu0 %v638
        %v731 = vpop.f32.mrf.mxu0
        %v732 = vadd.f32 %v657, %v731
        %v733 = vpop.f32.mrf.mxu0
        %v734 = vadd.f32 %v657, %v733
        %735 = vdwg.mxu0
        %736 = vst [vmem:[#allocation3] sm:$0xff] %v717
        %737 = vst [vmem:[#allocation3 + $0x8] sm:$0xff] %v719
        %738 = vst [vmem:[#allocation3 + $0x10] sm:$0xff] %v722
        %739 = vst [vmem:[#allocation3 + $0x18] sm:$0xff] %v724
        %740 = vst [vmem:[#allocation3 + $0x20] sm:$0xff] %v727
        %741 = vst [vmem:[#allocation3 + $0x28] sm:$0xff] %v729
        %742 = vst [vmem:[#allocation3 + $0x30] sm:$0xff] %v732
        %743 = vst [vmem:[#allocation3 + $0x38] sm:$0xff] %v734
        %v744 = vld [vmem:[#allocation11] sm:$0xf]
        %v745 = vld [vmem:[#allocation11 + $0x4] sm:$0xf]
        %v746 = vld [vmem:[#allocation11 + $0x8] sm:$0xf]
        %v747 = vld [vmem:[#allocation11 + $0xc] sm:$0xf]
        %v748 = vld [vmem:[#allocation11 + $0x10] sm:$0xf]
        %v749 = vld [vmem:[#allocation11 + $0x14] sm:$0xf]
        %v750 = vld [vmem:[#allocation11 + $0x18] sm:$0xf]
        %v751 = vld [vmem:[#allocation11 + $0x1c] sm:$0xf]
        %v752 = vld [vmem:[#allocation11 + $0x20] sm:$0xf]
        %v753 = vld [vmem:[#allocation11 + $0x24] sm:$0xf]
        %v754 = vld [vmem:[#allocation11 + $0x28] sm:$0xf]
        %v755 = vld [vmem:[#allocation11 + $0x2c] sm:$0xf]
        %v756 = vld [vmem:[#allocation11 + $0x30] sm:$0xf]
        %v757 = vld [vmem:[#allocation11 + $0x34] sm:$0xf]
        %v758 = vld [vmem:[#allocation11 + $0x38] sm:$0xf]
        %v759 = vld [vmem:[#allocation11 + $0x3c] sm:$0xf]
        %v760 = vld [vmem:[#allocation3] sm:$0xff]
        %v761 = vtanh.pop %v760
        %762 = vst [vmem:[#allocation3] sm:$0xff] %v761
        %s763 = scalar_lea.vmem [#allocation3], 8
        %v764 = vld [vmem:[%s763] sm:$0xff]
        %v765 = vpack.c.bf16 %v761, %v761
        %v782 = vunpack.c.l.b16 %v744
        %v783 = vunpack.c.l.b16 %v745
        %v784 = vunpack.c.l.b16 %v746
        %v785 = vunpack.c.l.b16 %v747
        %v786 = vunpack.c.l.b16 %v748
        %v787 = vunpack.c.l.b16 %v749
        %v788 = vunpack.c.l.b16 %v750
        %v789 = vunpack.c.l.b16 %v751
        %v790 = vunpack.c.l.b16 %v752
        %v791 = vunpack.c.l.b16 %v753
        %v792 = vunpack.c.l.b16 %v754
        %v793 = vunpack.c.l.b16 %v755
        %v794 = vunpack.c.l.b16 %v756
        %v795 = vunpack.c.l.b16 %v757
        %v796 = vunpack.c.l.b16 %v758
        %v797 = vunpack.c.l.b16 %v759
        %v798 = vpack.c.b16 %v783, %v782
        %v799 = vpack.c.b16 %v785, %v784
        %v800 = vpack.c.b16 %v787, %v786
        %v801 = vpack.c.b16 %v789, %v788
        %v802 = vpack.c.b16 %v791, %v790
        %v803 = vpack.c.b16 %v793, %v792
        %v804 = vpack.c.b16 %v795, %v794
        %v805 = vpack.c.b16 %v797, %v796
        %814 = vmatpush.bf16.msra.mxu0 %v805
        %815 = vmatpush.bf16.msra.mxu0 %v804
        %816 = vmatpush.bf16.msra.mxu0 %v803
        %817 = vmatpush.bf16.msra.mxu0 %v802
        %818 = vmatpush.bf16.msra.mxu0 %v801
        %819 = vmatpush.bf16.msra.mxu0 %v800
        %820 = vmatpush.bf16.msra.mxu0 %v799
        %821 = vmatpush.bf16.msra.mxu0 %v798
        %822 = vmatmul.bf16.gmra.mxu0 %v765
        %v823 = vpop.f32.mrf.mxu0
        %v824 = vadd.f32 0.0, %v823
        %v825 = vpop.f32.mrf.mxu0
        %826 = vdwg.mxu0
        %v827 = vadd.f32 %v764, %v824
        %v828 = vtanh.pop %v827
        %829 = vst [vmem:[%s763] sm:$0xff] %v828
        %s830 = scalar_lea.vmem [#allocation3], 16
        %v831 = vld [vmem:[%s830] sm:$0xff]
        %v832 = vpack.c.bf16 %v828, %v828
        %833 = vmatpush.bf16.msra.mxu0 %v805
        %834 = vmatpush.bf16.msra.mxu0 %v804
        %835 = vmatpush.bf16.msra.mxu0 %v803
        %836 = vmatpush.bf16.msra.mxu0 %v802
        %837 = vmatpush.bf16.msra.mxu0 %v801
        %838 = vmatpush.bf16.msra.mxu0 %v800
        %839 = vmatpush.bf16.msra.mxu0 %v799
        %840 = vmatpush.bf16.msra.mxu0 %v798
        %841 = vmatmul.bf16.gmra.mxu0 %v832
        %v842 = vpop.f32.mrf.mxu0
        %v843 = vadd.f32 0.0, %v842
        %v844 = vpop.f32.mrf.mxu0
        %845 = vdwg.mxu0
        %v846 = vadd.f32 %v831, %v843
        %v847 = vtanh.pop %v846
        %848 = vst [vmem:[%s830] sm:$0xff] %v847
        %s849 = scalar_lea.vmem [#allocation3], 24
        %v850 = vld [vmem:[%s849] sm:$0xff]
        %v851 = vpack.c.bf16 %v847, %v847
        %852 = vmatpush.bf16.msra.mxu0 %v805
        %853 = vmatpush.bf16.msra.mxu0 %v804
        %854 = vmatpush.bf16.msra.mxu0 %v803
        %855 = vmatpush.bf16.msra.mxu0 %v802
        %856 = vmatpush.bf16.msra.mxu0 %v801
        %857 = vmatpush.bf16.msra.mxu0 %v800
        %858 = vmatpush.bf16.msra.mxu0 %v799
        %859 = vmatpush.bf16.msra.mxu0 %v798
        %860 = vmatmul.bf16.gmra.mxu0 %v851
        %v861 = vpop.f32.mrf.mxu0
        %v862 = vadd.f32 0.0, %v861
        %v863 = vpop.f32.mrf.mxu0
        %864 = vdwg.mxu0
        %v865 = vadd.f32 %v850, %v862
        %v866 = vtanh.pop %v865
        %867 = vst [vmem:[%s849] sm:$0xff] %v866
        %s868 = scalar_lea.vmem [#allocation3], 32
        %v869 = vld [vmem:[%s868] sm:$0xff]
        %v870 = vpack.c.bf16 %v866, %v866
        %871 = vmatpush.bf16.msra.mxu0 %v805
        %872 = vmatpush.bf16.msra.mxu0 %v804
        %873 = vmatpush.bf16.msra.mxu0 %v803
        %874 = vmatpush.bf16.msra.mxu0 %v802
        %875 = vmatpush.bf16.msra.mxu0 %v801
        %876 = vmatpush.bf16.msra.mxu0 %v800
        %877 = vmatpush.bf16.msra.mxu0 %v799
        %878 = vmatpush.bf16.msra.mxu0 %v798
        %879 = vmatmul.bf16.gmra.mxu0 %v870
        %v880 = vpop.f32.mrf.mxu0
        %v881 = vadd.f32 0.0, %v880
        %v882 = vpop.f32.mrf.mxu0
        %883 = vdwg.mxu0
        %v884 = vadd.f32 %v869, %v881
        %v885 = vtanh.pop %v884
        %886 = vst [vmem:[%s868] sm:$0xff] %v885
        %s887 = scalar_lea.vmem [#allocation3], 40
        %v888 = vld [vmem:[%s887] sm:$0xff]
        %v889 = vpack.c.bf16 %v885, %v885
        %890 = vmatpush.bf16.msra.mxu0 %v805
        %891 = vmatpush.bf16.msra.mxu0 %v804
        %892 = vmatpush.bf16.msra.mxu0 %v803
        %893 = vmatpush.bf16.msra.mxu0 %v802
        %894 = vmatpush.bf16.msra.mxu0 %v801
        %895 = vmatpush.bf16.msra.mxu0 %v800
        %896 = vmatpush.bf16.msra.mxu0 %v799
        %897 = vmatpush.bf16.msra.mxu0 %v798
        %898 = vmatmul.bf16.gmra.mxu0 %v889
        %v899 = vpop.f32.mrf.mxu0
        %v900 = vadd.f32 0.0, %v899
        %v901 = vpop.f32.mrf.mxu0
        %902 = vdwg.mxu0
        %v903 = vadd.f32 %v888, %v900
        %v904 = vtanh.pop %v903
        %905 = vst [vmem:[%s887] sm:$0xff] %v904
        %s906 = scalar_lea.vmem [#allocation3], 48
        %v907 = vld [vmem:[%s906] sm:$0xff]
        %v908 = vpack.c.bf16 %v904, %v904
        %909 = vmatpush.bf16.msra.mxu0 %v805
        %910 = vmatpush.bf16.msra.mxu0 %v804
        %911 = vmatpush.bf16.msra.mxu0 %v803
        %912 = vmatpush.bf16.msra.mxu0 %v802
        %913 = vmatpush.bf16.msra.mxu0 %v801
        %914 = vmatpush.bf16.msra.mxu0 %v800
        %915 = vmatpush.bf16.msra.mxu0 %v799
        %916 = vmatpush.bf16.msra.mxu0 %v798
        %917 = vmatmul.bf16.gmra.mxu0 %v908
        %v918 = vpop.f32.mrf.mxu0
        %v919 = vadd.f32 0.0, %v918
        %v920 = vpop.f32.mrf.mxu0
        %921 = vdwg.mxu0
        %v922 = vadd.f32 %v907, %v919
        %v923 = vtanh.pop %v922
        %924 = vst [vmem:[%s906] sm:$0xff] %v923
        %s925 = scalar_lea.vmem [#allocation3], 56
        %v926 = vld [vmem:[%s925] sm:$0xff]
        %v927 = vpack.c.bf16 %v923, %v923
        %928 = vmatpush.bf16.msra.mxu0 %v805
        %929 = vmatpush.bf16.msra.mxu0 %v804
        %930 = vmatpush.bf16.msra.mxu0 %v803
        %931 = vmatpush.bf16.msra.mxu0 %v802
        %932 = vmatpush.bf16.msra.mxu0 %v801
        %933 = vmatpush.bf16.msra.mxu0 %v800
        %934 = vmatpush.bf16.msra.mxu0 %v799
        %935 = vmatpush.bf16.msra.mxu0 %v798
        %936 = vmatmul.bf16.gmra.mxu0 %v927
        %v937 = vpop.f32.mrf.mxu0
        %v938 = vadd.f32 0.0, %v937
        %v939 = vpop.f32.mrf.mxu0
        %940 = vdwg.mxu0
        %v941 = vadd.f32 %v926, %v938
        %v942 = vtanh.pop %v941
        %943 = vst [vmem:[%s925] sm:$0xff] %v942
        %v944 = vld [vmem:[#allocation3] sm:$0xff]
        %v945 = vld [vmem:[#allocation3 + $0x8] sm:$0xff]
        %v946 = vld [vmem:[#allocation3 + $0x10] sm:$0xff]
        %v947 = vld [vmem:[#allocation3 + $0x18] sm:$0xff]
        %v948 = vld [vmem:[#allocation3 + $0x20] sm:$0xff]
        %v949 = vld [vmem:[#allocation3 + $0x28] sm:$0xff]
        %v950 = vld [vmem:[#allocation3 + $0x30] sm:$0xff]
        %v951 = vld [vmem:[#allocation3 + $0x38] sm:$0xff]
        %v952 = vpack.c.bf16 %v945, %v944
        %v953 = vpack.c.bf16 %v947, %v946
        %v954 = vpack.c.bf16 %v949, %v948
        %v955 = vpack.c.bf16 %v951, %v950
        %v956 = vld [vmem:[#allocation12] sm:$0xf]
        %v957 = vld [vmem:[#allocation12 + $0x4] sm:$0xf]
        %v958 = vld [vmem:[#allocation12 + $0x8] sm:$0xf]
        %v959 = vld [vmem:[#allocation12 + $0xc] sm:$0xf]
        %v960 = vld [vmem:[#allocation12 + $0x10] sm:$0xf]
        %v961 = vld [vmem:[#allocation12 + $0x14] sm:$0xf]
        %v962 = vld [vmem:[#allocation12 + $0x18] sm:$0xf]
        %v963 = vld [vmem:[#allocation12 + $0x1c] sm:$0xf]
        %v964 = vld [vmem:[#allocation12 + $0x20] sm:$0xf]
        %v965 = vld [vmem:[#allocation12 + $0x24] sm:$0xf]
        %v966 = vld [vmem:[#allocation12 + $0x28] sm:$0xf]
        %v967 = vld [vmem:[#allocation12 + $0x2c] sm:$0xf]
        %v968 = vld [vmem:[#allocation12 + $0x30] sm:$0xf]
        %v969 = vld [vmem:[#allocation12 + $0x34] sm:$0xf]
        %v970 = vld [vmem:[#allocation12 + $0x38] sm:$0xf]
        %v971 = vld [vmem:[#allocation12 + $0x3c] sm:$0xf]
        %v972 = vld [vmem:[%s6] sm:$0x1]
        %v974 = vperm.slane %v972, 0
        %v992 = vunpack.c.l.b16 %v956
        %v993 = vunpack.c.l.b16 %v957
        %v994 = vunpack.c.l.b16 %v958
        %v995 = vunpack.c.l.b16 %v959
        %v996 = vunpack.c.l.b16 %v960
        %v997 = vunpack.c.l.b16 %v961
        %v998 = vunpack.c.l.b16 %v962
        %v999 = vunpack.c.l.b16 %v963
        %v1000 = vunpack.c.l.b16 %v964
        %v1001 = vunpack.c.l.b16 %v965
        %v1002 = vunpack.c.l.b16 %v966
        %v1003 = vunpack.c.l.b16 %v967
        %v1004 = vunpack.c.l.b16 %v968
        %v1005 = vunpack.c.l.b16 %v969
        %v1006 = vunpack.c.l.b16 %v970
        %v1007 = vunpack.c.l.b16 %v971
        %v1008 = vpack.c.b16 %v993, %v992
        %v1009 = vpack.c.b16 %v995, %v994
        %v1010 = vpack.c.b16 %v997, %v996
        %v1011 = vpack.c.b16 %v999, %v998
        %v1012 = vpack.c.b16 %v1001, %v1000
        %v1013 = vpack.c.b16 %v1003, %v1002
        %v1014 = vpack.c.b16 %v1005, %v1004
        %v1015 = vpack.c.b16 %v1007, %v1006
        %1024 = vmatpush.bf16.msra.mxu0 %v1015
        %1025 = vmatpush.bf16.msra.mxu0 %v1014
        %1026 = vmatpush.bf16.msra.mxu0 %v1013
        %1027 = vmatpush.bf16.msra.mxu0 %v1012
        %1028 = vmatpush.bf16.msra.mxu0 %v1011
        %1029 = vmatpush.bf16.msra.mxu0 %v1010
        %1030 = vmatpush.bf16.msra.mxu0 %v1009
        %1031 = vmatpush.bf16.msra.mxu0 %v1008
        %1032 = vmatmul.bf16.gmra.mxu0 %v952
        %v1033 = vpop.f32.mrf.mxu0
        %v1034 = vadd.f32 %v974, %v1033
        %v1035 = vpop.f32.mrf.mxu0
        %v1036 = vadd.f32 %v974, %v1035
        %1037 = vmatmul.bf16.gmra.mxu0 %v953
        %v1038 = vpop.f32.mrf.mxu0
        %v1039 = vadd.f32 %v974, %v1038
        %v1040 = vpop.f32.mrf.mxu0
        %v1041 = vadd.f32 %v974, %v1040
        %1042 = vmatmul.bf16.gmra.mxu0 %v954
        %v1043 = vpop.f32.mrf.mxu0
        %v1044 = vadd.f32 %v974, %v1043
        %v1045 = vpop.f32.mrf.mxu0
        %v1046 = vadd.f32 %v974, %v1045
        %1047 = vmatmul.bf16.gmra.mxu0 %v955
        %v1048 = vpop.f32.mrf.mxu0
        %v1049 = vadd.f32 %v974, %v1048
        %v1050 = vpop.f32.mrf.mxu0
        %v1051 = vadd.f32 %v974, %v1050
        %1052 = vdwg.mxu0
        %1053 = vst [vmem:[%s305] sm:$0xff] %v1034
        %1054 = vst [vmem:[%s305 + $0x8] sm:$0xff] %v1036
        %1055 = vst [vmem:[%s305 + $0x10] sm:$0xff] %v1039
        %1056 = vst [vmem:[%s305 + $0x18] sm:$0xff] %v1041
        %1057 = vst [vmem:[%s305 + $0x20] sm:$0xff] %v1044
        %1058 = vst [vmem:[%s305 + $0x28] sm:$0xff] %v1046
        %1059 = vst [vmem:[%s305 + $0x30] sm:$0xff] %v1049
        %1060 = vst [vmem:[%s305 + $0x38] sm:$0xff] %v1051
        %s1061 = sand.u32 %s166, 1
        %s1062 = scalar_lea.sflag [#allocation8], %s1061
        %s1063 = sand.u32 %s166, 1
        %s1064 = smul.addr %s1063, 64
        %s1065 = scalar_lea.vmem [#allocation14], %s1064
        // Predicated region
        $region61: #{tpu_custom_call.1} parent=43 // pred_check
          %p1066 = pneg %p176
        $region62: #{tpu_custom_call.1} parent=43 // pred_check_branch
          %1068 = sbr.rel (%p1066) target = $region64
        $region63: #{tpu_custom_call.1} parent=43 // pred_region
          %s1069 = smul.u32 8, %s32
          %1071 = vsyncadd %s1062, 0
          %s1072 = smul.addr %s1069, 8
          %s1073 = scalar_lea.hbm %s7, %s1072
          %s1074 = sshll.u32 %s1065, 4
          %s1075 = int_to_ptr.vmem [resolvable:$true] %s1074
          %s1076 = sshll.u32 %s1073, 4
          %s1077 = int_to_ptr.hbm [resolvable:$true] %s1076
          %1082 = dma.vmem_to_hbm [thread:$0]  %s1075, 1024, %s1077, %s1062, 128, 128, 8
        $region64: #{tpu_custom_call.1} parent=43 // pred_fallthru
          _
      $region44: #{tpu_custom_call.1} parent=5 // pred_fallthru
        _
      %p1083 = scmp.le.s32.totalorder 2, %s27
      // Predicated region
      $region65: #{tpu_custom_call.1} parent=5 // pred_check
        %p1084 = pneg %p1083
      $region66: #{tpu_custom_call.1} parent=5 // pred_check_branch
        %1086 = sbr.rel (%p1084) target = $region68
      $region67: #{tpu_custom_call.1} parent=5 // pred_region
        %s1087 = ssub.s32 %s27, 2
        // Predicated region
        $region69: #{tpu_custom_call.1} parent=67 // pred_check
          %p1088 = pneg %p182
        $region70: #{tpu_custom_call.1} parent=67 // pred_check_branch
          %1090 = sbr.rel (%p1088) target = $region72
        $region71: #{tpu_custom_call.1} parent=67 // pred_region
          %s1091 = sand.u32 %s167, 1
          %s1092 = scalar_lea.sflag [#allocation8], %s1091
          %s1093 = sand.u32 %s167, 1
          %s1094 = smul.addr %s1093, 64
          %s1095 = scalar_lea.vmem [#allocation14], %s1094
          %1097 = dma.done %s1092, 1024
        $region72: #{tpu_custom_call.1} parent=67 // pred_fallthru
          _
      $region68: #{tpu_custom_call.1} parent=5 // pred_fallthru
        _
    $region6: #{tpu_custom_call.1} parent=1 // loop_footer
      %s31 = sadd.s32 1, %s27
    $region7: #{tpu_custom_call.1} parent=1 // loop_footer_branch
      %26 = sbr.rel target = $region3
    $region8: #{tpu_custom_call.1} parent=1 // loop_exit
      _
    %1098 = vsyncpa [#allocation7], 1
    %s1099 = scalar_lea.sflag [#allocation7], 1
    %1100 = vsyncpa %s1099, 1
    %1101 = vsyncpa [#allocation10], 1
    %1102 = vsyncpa [#allocation13], 1
    %1103 = vsyncpa [#allocation8], 1
    %s1104 = scalar_lea.sflag [#allocation8], 1
    %1105 = vsyncpa %s1104, 1

</llo_original>
